<compile_context>
chip_gen: v6e
topology: v6e:2x2x1
jax: 0.10.0
libtpu: 0.0.40
codegen_flags: <defaults>
</compile_context>

<pallas_src>
import functools

import jax
import jax.numpy as jnp
from jax.experimental import pallas as pl
from jax.experimental.pallas import tpu as pltpu


def _cbam_kernel(x_ref, w1t_ref, w2t_ref, mwt_ref, o_ref, *, H, W, K):
    p = (K - 1) // 2
    HW = H * W

    x = x_ref[...].astype(jnp.float32)                 # (Nb, C, HW)
    Nb = x.shape[0]

    # ---------------- Channel attention (squeeze/excite on the MXU) --------
    avg_c = jnp.mean(x, axis=-1)                       # (Nb, C)  lane reduce
    max_c = jnp.max(x, axis=-1)                        # (Nb, C)
    pooled = jnp.concatenate([avg_c, max_c], axis=0)   # (2*Nb, C) both branches

    h = jnp.dot(pooled, w1t_ref[...], preferred_element_type=jnp.float32)
    h = jnp.maximum(h, 0.0)                            # (2*Nb, Cr_pad)
    z = jnp.dot(h, w2t_ref[...], preferred_element_type=jnp.float32)  # (2*Nb, C)

    ca = jax.nn.sigmoid(z[:Nb] + z[Nb:])               # (Nb, C)
    x_ca = x * ca[:, :, None]                          # (Nb, C, HW)

    # ---------------- Spatial attention (7x7 "same" conv via lane rolls) ---
    avg_s = jnp.mean(x_ca, axis=1)                     # (Nb, HW)
    max_s = jnp.max(x_ca, axis=1)                      # (Nb, HW)
    stk = jnp.concatenate([avg_s, max_s], axis=0)      # (2*Nb, HW): 1 roll/tap

    acc = jnp.zeros_like(stk)                          # f32 accumulator
    for dy in range(K):                                # fully unrolled 7x7 taps
        ry = dy - p
        for dx in range(K):
            rx = dx - p
            t = dy * K + dx
            # out[i] needs in_flat[i + ry*W + rx]  ->  lane roll by -(ry*W+rx)
            shift = (-(ry * W + rx)) % HW
            r = stk if shift == 0 else pltpu.roll(stk, shift=shift, axis=1)
            # mwt_ref[t] = border-validity mask premultiplied by the tap weight
            # (rows [0:Nb] carry the avg-map weight, rows [Nb:2Nb] the max-map).
            acc = acc + r * mwt_ref[t]

    sa = jax.nn.sigmoid(acc[:Nb] + acc[Nb:])           # (Nb, HW)
    o_ref[...] = (x_ca * sa[:, None, :]).astype(o_ref.dtype)


def _vmem_cap_bytes():
    """Physical VMEM per TensorCore; conservative 64 MiB if the query fails."""
    try:
        info = pltpu.get_tpu_info()
        cap = getattr(info, "vmem_capacity_bytes", None)
        if cap:
            return int(cap)
    except Exception:
        pass
    return 64 << 20


def _pick_batch_fold(N, bytes_per_item, target_bytes=4 << 20):
    """Largest divisor Nb of N under the byte target.

    Prefers an even number of grid steps (v7x has 2 TensorCores sharded over
    the 'parallel' axis) and Nb that fills vreg sublanes (2*Nb % 8 == 0);
    keeps >= 2 grid steps whenever N >= 2 so both cores get work.
    """
    cands = []
    for d in range(1, N + 1):
        if N % d:
            continue
        if d * bytes_per_item > target_bytes and d > 1:
            continue
        if N >= 2 and N // d < 2:
            continue
        cands.append(d)
    if not cands:
        return 1

    def score(d):
        steps = N // d
        return ((steps % 2 == 0) if N >= 2 else True, (2 * d) % 8 == 0, d)

    return max(cands, key=score)


def _build_mask_weight_table(sa_w, H, W, K, Nb):
    """(K*K, 2*Nb, H*W) f32 table: tap weight x border-validity mask per map."""
    p = (K - 1) // 2
    HW = H * W
    lane = jnp.arange(HW, dtype=jnp.int32)
    row = lane // W
    col = lane - row * W
    taps = []
    for dy in range(K):
        ry = dy - p
        for dx in range(K):
            rx = dx - p
            ok = ((row + ry >= 0) & (row + ry < H) &
                  (col + rx >= 0) & (col + rx < W)).astype(jnp.float32)  # (HW,)
            wa = sa_w[0, dy, dx] * ok                  # avg-map channel weight
            wm = sa_w[1, dy, dx] * ok                  # max-map channel weight
            taps.append(jnp.concatenate(
                [jnp.broadcast_to(wa, (Nb, HW)),
                 jnp.broadcast_to(wm, (Nb, HW))], axis=0))
    return jnp.stack(taps, axis=0)                     # (K*K, 2*Nb, HW)


def cbam_pallas(x, w1, w2, sa_w, *, io_dtype=None):
    """x: (N, C, H, W).  w1: (C//16, C), w2: (C, C//16), sa_w: (2, K, K).

    io_dtype: optional activation I/O dtype (e.g. jnp.bfloat16) to halve HBM
    traffic; in-kernel accumulation stays f32. Default keeps x.dtype (f32 here
    to match the PyTorch module exactly).
    """
    N, C, H, W = x.shape
    Cr = w1.shape[0]
    K = sa_w.shape[-1]
    HW = H * W
    # TODO(synk): pad H*W to a multiple of 128 (with masked taps / sliced store)
    # to support spatial sizes like 56x56 / 14x14 / 7x7.
    assert HW % 128 == 0, "cbam_pallas requires H*W to be a multiple of 128"

    io_dtype = x.dtype if io_dtype is None else io_dtype
    x2 = x.reshape(N, C, HW).astype(io_dtype)          # lane-dense activations

    # fc weights as (C, Cr_pad) / (Cr_pad, C) with the hidden dim zero-padded to
    # a full 128-lane tile. Exact: padded columns of w1t and padded rows of w2t
    # are zero, so the extra hidden units contribute nothing.
    Cr_pad = max(128, ((Cr + 127) // 128) * 128)
    w1t = jnp.zeros((C, Cr_pad), jnp.float32).at[:, :Cr].set(
        jnp.transpose(w1).astype(jnp.float32))
    w2t = jnp.zeros((Cr_pad, C), jnp.float32).at[:Cr, :].set(
        jnp.transpose(w2).astype(jnp.float32))

    KK = K * K
    itemsize = jnp.dtype(io_dtype).itemsize
    # Per-item footprint used by the picker: x block + its share of the mask
    # table (the table scales with Nb too).
    bytes_per_item = C * HW * itemsize + 2 * KK * HW * 4
    Nb = _pick_batch_fold(N, bytes_per_item, target_bytes=4 << 20)

    mwt = _build_mask_weight_table(sa_w.astype(jnp.float32), H, W, K, Nb)

    block_bytes = Nb * C * HW * itemsize
    resident_bytes = (w1t.size + w2t.size + mwt.size) * 4
    phys_vmem = _vmem_cap_bytes()
    budget_cap = (48 << 20) if phys_vmem <= (64 << 20) else (96 << 20)
    vmem_limit = int(min(
        max(32 << 20, 4 * block_bytes + 2 * resident_bytes + (8 << 20)),
        budget_cap))

    kernel = functools.partial(_cbam_kernel, H=H, W=W, K=K)
    out2 = pl.pallas_call(
        kernel,
        out_shape=jax.ShapeDtypeStruct((N, C, HW), io_dtype),
        grid=(N // Nb,),
        in_specs=[
            pl.BlockSpec((Nb, C, HW), lambda b: (b, 0, 0)),
            pl.BlockSpec((C, Cr_pad), lambda b: (0, 0)),
            pl.BlockSpec((Cr_pad, C), lambda b: (0, 0)),
            pl.BlockSpec((KK, 2 * Nb, HW), lambda b: (0, 0, 0)),
        ],
        out_specs=pl.BlockSpec((Nb, C, HW), lambda b: (b, 0, 0)),
        compiler_params=pltpu.CompilerParams(
            dimension_semantics=("parallel",),
            vmem_limit_bytes=vmem_limit,
        ),
    )(x2, w1t, w2t, mwt)
    return out2.reshape(N, C, H, W).astype(x.dtype)


def cbam_ref(x, w1, w2, sa_w):
    """Pure-JAX reference mirroring the PyTorch module."""
    avg = x.mean(axis=(2, 3))                                  # (N, C)
    mx = x.max(axis=(2, 3))                                    # (N, C)

    def mlp(v):
        h = jnp.maximum(v @ w1.T, 0.0)                         # (N, Cr)
        return h @ w2.T                                        # (N, C)

    ca = jax.nn.sigmoid(mlp(avg) + mlp(mx))                    # (N, C)
    x_ca = x * ca[:, :, None, None]

    avg_s = x_ca.mean(axis=1, keepdims=True)                   # (N, 1, H, W)
    max_s = x_ca.max(axis=1, keepdims=True)                    # (N, 1, H, W)
    maps = jnp.concatenate([avg_s, max_s], axis=1)             # (N, 2, H, W)
    pad = (sa_w.shape[-1] - 1) // 2
    conv = jax.lax.conv_general_dilated(
        maps, sa_w[None], (1, 1), [(pad, pad), (pad, pad)],
        dimension_numbers=("NCHW", "OIHW", "NCHW"))
    sa = jax.nn.sigmoid(conv)                                  # (N, 1, H, W)
    return x_ca * sa


if __name__ == "__main__":
    N, C, H, W = 2, 32, 16, 16        # C must be >= 16 so that C // 16 >= 1
    Cr = C // 16
    K = 7

    key = jax.random.PRNGKey(0)
    kx, k1, k2, k3 = jax.random.split(key, 4)
    x = jax.random.normal(kx, (N, C, H, W), jnp.float32)
    w1 = jax.random.normal(k1, (Cr, C), jnp.float32) * 0.1       # fc1.weight (no bias)
    w2 = jax.random.normal(k2, (C, Cr), jnp.float32) * 0.1       # fc2.weight (no bias)
    sa_w = jax.random.normal(k3, (2, K, K), jnp.float32) * 0.05  # SA conv weight

    out = jax.block_until_ready(cbam_pallas(x, w1, w2, sa_w))
    ref = jax.block_until_ready(cbam_ref(x, w1, w2, sa_w))

    assert out.shape == (N, C, H, W)
    err = float(jnp.max(jnp.abs(out - ref)))
    assert jnp.allclose(out, ref, atol=1e-3, rtol=1e-3), f"max abs err {err}"
    print("KERNEL_OK")
</pallas_src>

<mosaic_0001>
module attributes {stable_mosaic.version = 11 : i64} {
  func.func @_cbam_kernel(%arg0: i32, %arg1: memref<1x32x256xf32, #tpu.memory_space<vmem>>, %arg2: memref<32x128xf32, #tpu.memory_space<vmem>>, %arg3: memref<128x32xf32, #tpu.memory_space<vmem>>, %arg4: memref<49x2x256xf32, #tpu.memory_space<vmem>>, %arg5: memref<1x32x256xf32, #tpu.memory_space<vmem>>) attributes {dimension_semantics = [#tpu.dimension_semantics<parallel>], iteration_bounds = array<i64: 2>, scalar_prefetch = 0 : i64, scratch_operands = 0 : i64, tpu.core_type = #tpu.core_type<tc>, window_params = [{transform_indices = @transform_0, window_bounds = array<i64: 1, 32, 256>}, {pipeline_mode = #tpu.pipeline_mode<synchronous>, transform_indices = @transform_1, window_bounds = array<i64: 32, 128>}, {pipeline_mode = #tpu.pipeline_mode<synchronous>, transform_indices = @transform_2, window_bounds = array<i64: 128, 32>}, {pipeline_mode = #tpu.pipeline_mode<synchronous>, transform_indices = @transform_3, window_bounds = array<i64: 49, 2, 256>}, {transform_indices = @transform_4, window_bounds = array<i64: 1, 32, 256>}]} {
    %c0 = arith.constant 0 : index
    %c0_0 = arith.constant 0 : index
    %c0_1 = arith.constant 0 : index
    %0 = vector.load %arg1[%c0, %c0_0, %c0_1] : memref<1x32x256xf32, #tpu.memory_space<vmem>>, vector<1x32x256xf32>
    %cst = arith.constant dense<0.000000e+00> : vector<1x32xf32>
    %1 = vector.multi_reduction <add>, %0, %cst [2] : vector<1x32x256xf32> to vector<1x32xf32>
    %cst_2 = arith.constant 2.560000e+02 : f32
    %2 = vector.broadcast %cst_2 : f32 to vector<1x32xf32>
    %3 = arith.divf %1, %2 : vector<1x32xf32>
    %cst_3 = arith.constant dense<0xFF800000> : vector<1x32xf32>
    %4 = vector.multi_reduction <maximumf>, %0, %cst_3 [2] : vector<1x32x256xf32> to vector<1x32xf32>
    %5 = tpu.concatenate %3, %4 in 0 : vector<1x32xf32>, vector<1x32xf32> -> vector<2x32xf32>
    %c0_4 = arith.constant 0 : index
    %c0_5 = arith.constant 0 : index
    %6 = vector.load %arg2[%c0_4, %c0_5] : memref<32x128xf32, #tpu.memory_space<vmem>>, vector<32x128xf32>
    %cst_6 = arith.constant dense<0.000000e+00> : vector<2x128xf32>
    %7 = tpu.matmul %5, %6, %cst_6 {dimension_numbers = #tpu.dot_dimension_numbers<[1], [0], [0], [1], [0, 0, 1, 1], [], []>} : vector<2x32xf32>, vector<32x128xf32>, vector<2x128xf32> -> vector<2x128xf32>
    %cst_7 = arith.constant 0.000000e+00 : f32
    %8 = vector.broadcast %cst_7 : f32 to vector<2x128xf32>
    %9 = arith.maximumf %7, %8 : vector<2x128xf32>
    %c0_8 = arith.constant 0 : index
    %c0_9 = arith.constant 0 : index
    %10 = vector.load %arg3[%c0_8, %c0_9] : memref<128x32xf32, #tpu.memory_space<vmem>>, vector<128x32xf32>
    %cst_10 = arith.constant dense<0.000000e+00> : vector<2x32xf32>
    %11 = tpu.matmul %9, %10, %cst_10 {dimension_numbers = #tpu.dot_dimension_numbers<[1], [0], [0], [1], [0, 0, 1, 1], [], []>} : vector<2x128xf32>, vector<128x32xf32>, vector<2x32xf32> -> vector<2x32xf32>
    %12 = vector.extract_strided_slice %11 {offsets = [0, 0], sizes = [1, 32], strides = [1, 1]} : vector<2x32xf32> to vector<1x32xf32>
    %13 = vector.extract_strided_slice %11 {offsets = [1, 0], sizes = [1, 32], strides = [1, 1]} : vector<2x32xf32> to vector<1x32xf32>
    %14 = arith.addf %12, %13 : vector<1x32xf32>
    %15 = arith.negf %14 : vector<1x32xf32>
    %16 = math.exp %15 : vector<1x32xf32>
    %cst_11 = arith.constant 1.000000e+00 : f32
    %17 = vector.broadcast %cst_11 : f32 to vector<1x32xf32>
    %18 = arith.addf %17, %16 : vector<1x32xf32>
    %19 = arith.divf %17, %18 : vector<1x32xf32>
    %20 = vector.shape_cast %19 : vector<1x32xf32> to vector<1x32x1xf32>
    %21 = vector.broadcast %20 : vector<1x32x1xf32> to vector<1x32x256xf32>
    %22 = arith.mulf %0, %21 : vector<1x32x256xf32>
    %cst_12 = arith.constant dense<0.000000e+00> : vector<1x256xf32>
    %23 = vector.multi_reduction <add>, %22, %cst_12 [1] : vector<1x32x256xf32> to vector<1x256xf32>
    %cst_13 = arith.constant 3.200000e+01 : f32
    %24 = vector.broadcast %cst_13 : f32 to vector<1x256xf32>
    %25 = arith.divf %23, %24 : vector<1x256xf32>
    %cst_14 = arith.constant dense<0xFF800000> : vector<1x256xf32>
    %26 = vector.multi_reduction <maximumf>, %22, %cst_14 [1] : vector<1x32x256xf32> to vector<1x256xf32>
    %27 = tpu.concatenate %25, %26 in 0 : vector<1x256xf32>, vector<1x256xf32> -> vector<2x256xf32>
    %cst_15 = arith.constant 0.000000e+00 : f32
    %28 = vector.broadcast %cst_15 : f32 to vector<2x256xf32>
    %c51_i32 = arith.constant 51 : i32
    %29 = tpu.dynamic_rotate %27 by %c51_i32 dim 1 : vector<2x256xf32>, i32 -> vector<2x256xf32>
    %c0_16 = arith.constant 0 : index
    %c0_17 = arith.constant 0 : index
    %c0_18 = arith.constant 0 : index
    %30 = vector.load %arg4[%c0_16, %c0_17, %c0_18] : memref<49x2x256xf32, #tpu.memory_space<vmem>>, vector<1x2x256xf32>
    %31 = vector.shape_cast %30 : vector<1x2x256xf32> to vector<2x256xf32>
    %32 = arith.mulf %29, %31 : vector<2x256xf32>
    %33 = arith.addf %28, %32 : vector<2x256xf32>
    %c50_i32 = arith.constant 50 : i32
    %34 = tpu.dynamic_rotate %27 by %c50_i32 dim 1 : vector<2x256xf32>, i32 -> vector<2x256xf32>
    %c1 = arith.constant 1 : index
    %c0_19 = arith.constant 0 : index
    %c0_20 = arith.constant 0 : index
    %35 = vector.load %arg4[%c1, %c0_19, %c0_20] : memref<49x2x256xf32, #tpu.memory_space<vmem>>, vector<1x2x256xf32>
    %36 = vector.shape_cast %35 : vector<1x2x256xf32> to vector<2x256xf32>
    %37 = arith.mulf %34, %36 : vector<2x256xf32>
    %38 = arith.addf %33, %37 : vector<2x256xf32>
    %c49_i32 = arith.constant 49 : i32
    %39 = tpu.dynamic_rotate %27 by %c49_i32 dim 1 : vector<2x256xf32>, i32 -> vector<2x256xf32>
    %c2 = arith.constant 2 : index
    %c0_21 = arith.constant 0 : index
    %c0_22 = arith.constant 0 : index
    %40 = vector.load %arg4[%c2, %c0_21, %c0_22] : memref<49x2x256xf32, #tpu.memory_space<vmem>>, vector<1x2x256xf32>
    %41 = vector.shape_cast %40 : vector<1x2x256xf32> to vector<2x256xf32>
    %42 = arith.mulf %39, %41 : vector<2x256xf32>
    %43 = arith.addf %38, %42 : vector<2x256xf32>
    %c48_i32 = arith.constant 48 : i32
    %44 = tpu.dynamic_rotate %27 by %c48_i32 dim 1 : vector<2x256xf32>, i32 -> vector<2x256xf32>
    %c3 = arith.constant 3 : index
    %c0_23 = arith.constant 0 : index
    %c0_24 = arith.constant 0 : index
    %45 = vector.load %arg4[%c3, %c0_23, %c0_24] : memref<49x2x256xf32, #tpu.memory_space<vmem>>, vector<1x2x256xf32>
    %46 = vector.shape_cast %45 : vector<1x2x256xf32> to vector<2x256xf32>
    %47 = arith.mulf %44, %46 : vector<2x256xf32>
    %48 = arith.addf %43, %47 : vector<2x256xf32>
    %c47_i32 = arith.constant 47 : i32
    %49 = tpu.dynamic_rotate %27 by %c47_i32 dim 1 : vector<2x256xf32>, i32 -> vector<2x256xf32>
    %c4 = arith.constant 4 : index
    %c0_25 = arith.constant 0 : index
    %c0_26 = arith.constant 0 : index
    %50 = vector.load %arg4[%c4, %c0_25, %c0_26] : memref<49x2x256xf32, #tpu.memory_space<vmem>>, vector<1x2x256xf32>
    %51 = vector.shape_cast %50 : vector<1x2x256xf32> to vector<2x256xf32>
    %52 = arith.mulf %49, %51 : vector<2x256xf32>
    %53 = arith.addf %48, %52 : vector<2x256xf32>
    %c46_i32 = arith.constant 46 : i32
    %54 = tpu.dynamic_rotate %27 by %c46_i32 dim 1 : vector<2x256xf32>, i32 -> vector<2x256xf32>
    %c5 = arith.constant 5 : index
    %c0_27 = arith.constant 0 : index
    %c0_28 = arith.constant 0 : index
    %55 = vector.load %arg4[%c5, %c0_27, %c0_28] : memref<49x2x256xf32, #tpu.memory_space<vmem>>, vector<1x2x256xf32>
    %56 = vector.shape_cast %55 : vector<1x2x256xf32> to vector<2x256xf32>
    %57 = arith.mulf %54, %56 : vector<2x256xf32>
    %58 = arith.addf %53, %57 : vector<2x256xf32>
    %c45_i32 = arith.constant 45 : i32
    %59 = tpu.dynamic_rotate %27 by %c45_i32 dim 1 : vector<2x256xf32>, i32 -> vector<2x256xf32>
    %c6 = arith.constant 6 : index
    %c0_29 = arith.constant 0 : index
    %c0_30 = arith.constant 0 : index
    %60 = vector.load %arg4[%c6, %c0_29, %c0_30] : memref<49x2x256xf32, #tpu.memory_space<vmem>>, vector<1x2x256xf32>
    %61 = vector.shape_cast %60 : vector<1x2x256xf32> to vector<2x256xf32>
    %62 = arith.mulf %59, %61 : vector<2x256xf32>
    %63 = arith.addf %58, %62 : vector<2x256xf32>
    %c35_i32 = arith.constant 35 : i32
    %64 = tpu.dynamic_rotate %27 by %c35_i32 dim 1 : vector<2x256xf32>, i32 -> vector<2x256xf32>
    %c7 = arith.constant 7 : index
    %c0_31 = arith.constant 0 : index
    %c0_32 = arith.constant 0 : index
    %65 = vector.load %arg4[%c7, %c0_31, %c0_32] : memref<49x2x256xf32, #tpu.memory_space<vmem>>, vector<1x2x256xf32>
    %66 = vector.shape_cast %65 : vector<1x2x256xf32> to vector<2x256xf32>
    %67 = arith.mulf %64, %66 : vector<2x256xf32>
    %68 = arith.addf %63, %67 : vector<2x256xf32>
    %c34_i32 = arith.constant 34 : i32
    %69 = tpu.dynamic_rotate %27 by %c34_i32 dim 1 : vector<2x256xf32>, i32 -> vector<2x256xf32>
    %c8 = arith.constant 8 : index
    %c0_33 = arith.constant 0 : index
    %c0_34 = arith.constant 0 : index
    %70 = vector.load %arg4[%c8, %c0_33, %c0_34] : memref<49x2x256xf32, #tpu.memory_space<vmem>>, vector<1x2x256xf32>
    %71 = vector.shape_cast %70 : vector<1x2x256xf32> to vector<2x256xf32>
    %72 = arith.mulf %69, %71 : vector<2x256xf32>
    %73 = arith.addf %68, %72 : vector<2x256xf32>
    %c33_i32 = arith.constant 33 : i32
    %74 = tpu.dynamic_rotate %27 by %c33_i32 dim 1 : vector<2x256xf32>, i32 -> vector<2x256xf32>
    %c9 = arith.constant 9 : index
    %c0_35 = arith.constant 0 : index
    %c0_36 = arith.constant 0 : index
    %75 = vector.load %arg4[%c9, %c0_35, %c0_36] : memref<49x2x256xf32, #tpu.memory_space<vmem>>, vector<1x2x256xf32>
    %76 = vector.shape_cast %75 : vector<1x2x256xf32> to vector<2x256xf32>
    %77 = arith.mulf %74, %76 : vector<2x256xf32>
    %78 = arith.addf %73, %77 : vector<2x256xf32>
    %c32_i32 = arith.constant 32 : i32
    %79 = tpu.dynamic_rotate %27 by %c32_i32 dim 1 : vector<2x256xf32>, i32 -> vector<2x256xf32>
    %c10 = arith.constant 10 : index
    %c0_37 = arith.constant 0 : index
    %c0_38 = arith.constant 0 : index
    %80 = vector.load %arg4[%c10, %c0_37, %c0_38] : memref<49x2x256xf32, #tpu.memory_space<vmem>>, vector<1x2x256xf32>
    %81 = vector.shape_cast %80 : vector<1x2x256xf32> to vector<2x256xf32>
    %82 = arith.mulf %79, %81 : vector<2x256xf32>
    %83 = arith.addf %78, %82 : vector<2x256xf32>
    %c31_i32 = arith.constant 31 : i32
    %84 = tpu.dynamic_rotate %27 by %c31_i32 dim 1 : vector<2x256xf32>, i32 -> vector<2x256xf32>
    %c11 = arith.constant 11 : index
    %c0_39 = arith.constant 0 : index
    %c0_40 = arith.constant 0 : index
    %85 = vector.load %arg4[%c11, %c0_39, %c0_40] : memref<49x2x256xf32, #tpu.memory_space<vmem>>, vector<1x2x256xf32>
    %86 = vector.shape_cast %85 : vector<1x2x256xf32> to vector<2x256xf32>
    %87 = arith.mulf %84, %86 : vector<2x256xf32>
    %88 = arith.addf %83, %87 : vector<2x256xf32>
    %c30_i32 = arith.constant 30 : i32
    %89 = tpu.dynamic_rotate %27 by %c30_i32 dim 1 : vector<2x256xf32>, i32 -> vector<2x256xf32>
    %c12 = arith.constant 12 : index
    %c0_41 = arith.constant 0 : index
    %c0_42 = arith.constant 0 : index
    %90 = vector.load %arg4[%c12, %c0_41, %c0_42] : memref<49x2x256xf32, #tpu.memory_space<vmem>>, vector<1x2x256xf32>
    %91 = vector.shape_cast %90 : vector<1x2x256xf32> to vector<2x256xf32>
    %92 = arith.mulf %89, %91 : vector<2x256xf32>
    %93 = arith.addf %88, %92 : vector<2x256xf32>
    %c29_i32 = arith.constant 29 : i32
    %94 = tpu.dynamic_rotate %27 by %c29_i32 dim 1 : vector<2x256xf32>, i32 -> vector<2x256xf32>
    %c13 = arith.constant 13 : index
    %c0_43 = arith.constant 0 : index
    %c0_44 = arith.constant 0 : index
    %95 = vector.load %arg4[%c13, %c0_43, %c0_44] : memref<49x2x256xf32, #tpu.memory_space<vmem>>, vector<1x2x256xf32>
    %96 = vector.shape_cast %95 : vector<1x2x256xf32> to vector<2x256xf32>
    %97 = arith.mulf %94, %96 : vector<2x256xf32>
    %98 = arith.addf %93, %97 : vector<2x256xf32>
    %c19_i32 = arith.constant 19 : i32
    %99 = tpu.dynamic_rotate %27 by %c19_i32 dim 1 : vector<2x256xf32>, i32 -> vector<2x256xf32>
    %c14 = arith.constant 14 : index
    %c0_45 = arith.constant 0 : index
    %c0_46 = arith.constant 0 : index
    %100 = vector.load %arg4[%c14, %c0_45, %c0_46] : memref<49x2x256xf32, #tpu.memory_space<vmem>>, vector<1x2x256xf32>
    %101 = vector.shape_cast %100 : vector<1x2x256xf32> to vector<2x256xf32>
    %102 = arith.mulf %99, %101 : vector<2x256xf32>
    %103 = arith.addf %98, %102 : vector<2x256xf32>
    %c18_i32 = arith.constant 18 : i32
    %104 = tpu.dynamic_rotate %27 by %c18_i32 dim 1 : vector<2x256xf32>, i32 -> vector<2x256xf32>
    %c15 = arith.constant 15 : index
    %c0_47 = arith.constant 0 : index
    %c0_48 = arith.constant 0 : index
    %105 = vector.load %arg4[%c15, %c0_47, %c0_48] : memref<49x2x256xf32, #tpu.memory_space<vmem>>, vector<1x2x256xf32>
    %106 = vector.shape_cast %105 : vector<1x2x256xf32> to vector<2x256xf32>
    %107 = arith.mulf %104, %106 : vector<2x256xf32>
    %108 = arith.addf %103, %107 : vector<2x256xf32>
    %c17_i32 = arith.constant 17 : i32
    %109 = tpu.dynamic_rotate %27 by %c17_i32 dim 1 : vector<2x256xf32>, i32 -> vector<2x256xf32>
    %c16 = arith.constant 16 : index
    %c0_49 = arith.constant 0 : index
    %c0_50 = arith.constant 0 : index
    %110 = vector.load %arg4[%c16, %c0_49, %c0_50] : memref<49x2x256xf32, #tpu.memory_space<vmem>>, vector<1x2x256xf32>
    %111 = vector.shape_cast %110 : vector<1x2x256xf32> to vector<2x256xf32>
    %112 = arith.mulf %109, %111 : vector<2x256xf32>
    %113 = arith.addf %108, %112 : vector<2x256xf32>
    %c16_i32 = arith.constant 16 : i32
    %114 = tpu.dynamic_rotate %27 by %c16_i32 dim 1 : vector<2x256xf32>, i32 -> vector<2x256xf32>
    %c17 = arith.constant 17 : index
    %c0_51 = arith.constant 0 : index
    %c0_52 = arith.constant 0 : index
    %115 = vector.load %arg4[%c17, %c0_51, %c0_52] : memref<49x2x256xf32, #tpu.memory_space<vmem>>, vector<1x2x256xf32>
    %116 = vector.shape_cast %115 : vector<1x2x256xf32> to vector<2x256xf32>
    %117 = arith.mulf %114, %116 : vector<2x256xf32>
    %118 = arith.addf %113, %117 : vector<2x256xf32>
    %c15_i32 = arith.constant 15 : i32
    %119 = tpu.dynamic_rotate %27 by %c15_i32 dim 1 : vector<2x256xf32>, i32 -> vector<2x256xf32>
    %c18 = arith.constant 18 : index
    %c0_53 = arith.constant 0 : index
    %c0_54 = arith.constant 0 : index
    %120 = vector.load %arg4[%c18, %c0_53, %c0_54] : memref<49x2x256xf32, #tpu.memory_space<vmem>>, vector<1x2x256xf32>
    %121 = vector.shape_cast %120 : vector<1x2x256xf32> to vector<2x256xf32>
    %122 = arith.mulf %119, %121 : vector<2x256xf32>
    %123 = arith.addf %118, %122 : vector<2x256xf32>
    %c14_i32 = arith.constant 14 : i32
    %124 = tpu.dynamic_rotate %27 by %c14_i32 dim 1 : vector<2x256xf32>, i32 -> vector<2x256xf32>
    %c19 = arith.constant 19 : index
    %c0_55 = arith.constant 0 : index
    %c0_56 = arith.constant 0 : index
    %125 = vector.load %arg4[%c19, %c0_55, %c0_56] : memref<49x2x256xf32, #tpu.memory_space<vmem>>, vector<1x2x256xf32>
    %126 = vector.shape_cast %125 : vector<1x2x256xf32> to vector<2x256xf32>
    %127 = arith.mulf %124, %126 : vector<2x256xf32>
    %128 = arith.addf %123, %127 : vector<2x256xf32>
    %c13_i32 = arith.constant 13 : i32
    %129 = tpu.dynamic_rotate %27 by %c13_i32 dim 1 : vector<2x256xf32>, i32 -> vector<2x256xf32>
    %c20 = arith.constant 20 : index
    %c0_57 = arith.constant 0 : index
    %c0_58 = arith.constant 0 : index
    %130 = vector.load %arg4[%c20, %c0_57, %c0_58] : memref<49x2x256xf32, #tpu.memory_space<vmem>>, vector<1x2x256xf32>
    %131 = vector.shape_cast %130 : vector<1x2x256xf32> to vector<2x256xf32>
    %132 = arith.mulf %129, %131 : vector<2x256xf32>
    %133 = arith.addf %128, %132 : vector<2x256xf32>
    %c3_i32 = arith.constant 3 : i32
    %134 = tpu.dynamic_rotate %27 by %c3_i32 dim 1 : vector<2x256xf32>, i32 -> vector<2x256xf32>
    %c21 = arith.constant 21 : index
    %c0_59 = arith.constant 0 : index
    %c0_60 = arith.constant 0 : index
    %135 = vector.load %arg4[%c21, %c0_59, %c0_60] : memref<49x2x256xf32, #tpu.memory_space<vmem>>, vector<1x2x256xf32>
    %136 = vector.shape_cast %135 : vector<1x2x256xf32> to vector<2x256xf32>
    %137 = arith.mulf %134, %136 : vector<2x256xf32>
    %138 = arith.addf %133, %137 : vector<2x256xf32>
    %c2_i32 = arith.constant 2 : i32
    %139 = tpu.dynamic_rotate %27 by %c2_i32 dim 1 : vector<2x256xf32>, i32 -> vector<2x256xf32>
    %c22 = arith.constant 22 : index
    %c0_61 = arith.constant 0 : index
    %c0_62 = arith.constant 0 : index
    %140 = vector.load %arg4[%c22, %c0_61, %c0_62] : memref<49x2x256xf32, #tpu.memory_space<vmem>>, vector<1x2x256xf32>
    %141 = vector.shape_cast %140 : vector<1x2x256xf32> to vector<2x256xf32>
    %142 = arith.mulf %139, %141 : vector<2x256xf32>
    %143 = arith.addf %138, %142 : vector<2x256xf32>
    %c1_i32 = arith.constant 1 : i32
    %144 = tpu.dynamic_rotate %27 by %c1_i32 dim 1 : vector<2x256xf32>, i32 -> vector<2x256xf32>
    %c23 = arith.constant 23 : index
    %c0_63 = arith.constant 0 : index
    %c0_64 = arith.constant 0 : index
    %145 = vector.load %arg4[%c23, %c0_63, %c0_64] : memref<49x2x256xf32, #tpu.memory_space<vmem>>, vector<1x2x256xf32>
    %146 = vector.shape_cast %145 : vector<1x2x256xf32> to vector<2x256xf32>
    %147 = arith.mulf %144, %146 : vector<2x256xf32>
    %148 = arith.addf %143, %147 : vector<2x256xf32>
    %c24 = arith.constant 24 : index
    %c0_65 = arith.constant 0 : index
    %c0_66 = arith.constant 0 : index
    %149 = vector.load %arg4[%c24, %c0_65, %c0_66] : memref<49x2x256xf32, #tpu.memory_space<vmem>>, vector<1x2x256xf32>
    %150 = vector.shape_cast %149 : vector<1x2x256xf32> to vector<2x256xf32>
    %151 = arith.mulf %27, %150 : vector<2x256xf32>
    %152 = arith.addf %148, %151 : vector<2x256xf32>
    %c255_i32 = arith.constant 255 : i32
    %153 = tpu.dynamic_rotate %27 by %c255_i32 dim 1 : vector<2x256xf32>, i32 -> vector<2x256xf32>
    %c25 = arith.constant 25 : index
    %c0_67 = arith.constant 0 : index
    %c0_68 = arith.constant 0 : index
    %154 = vector.load %arg4[%c25, %c0_67, %c0_68] : memref<49x2x256xf32, #tpu.memory_space<vmem>>, vector<1x2x256xf32>
    %155 = vector.shape_cast %154 : vector<1x2x256xf32> to vector<2x256xf32>
    %156 = arith.mulf %153, %155 : vector<2x256xf32>
    %157 = arith.addf %152, %156 : vector<2x256xf32>
    %c254_i32 = arith.constant 254 : i32
    %158 = tpu.dynamic_rotate %27 by %c254_i32 dim 1 : vector<2x256xf32>, i32 -> vector<2x256xf32>
    %c26 = arith.constant 26 : index
    %c0_69 = arith.constant 0 : index
    %c0_70 = arith.constant 0 : index
    %159 = vector.load %arg4[%c26, %c0_69, %c0_70] : memref<49x2x256xf32, #tpu.memory_space<vmem>>, vector<1x2x256xf32>
    %160 = vector.shape_cast %159 : vector<1x2x256xf32> to vector<2x256xf32>
    %161 = arith.mulf %158, %160 : vector<2x256xf32>
    %162 = arith.addf %157, %161 : vector<2x256xf32>
    %c253_i32 = arith.constant 253 : i32
    %163 = tpu.dynamic_rotate %27 by %c253_i32 dim 1 : vector<2x256xf32>, i32 -> vector<2x256xf32>
    %c27 = arith.constant 27 : index
    %c0_71 = arith.constant 0 : index
    %c0_72 = arith.constant 0 : index
    %164 = vector.load %arg4[%c27, %c0_71, %c0_72] : memref<49x2x256xf32, #tpu.memory_space<vmem>>, vector<1x2x256xf32>
    %165 = vector.shape_cast %164 : vector<1x2x256xf32> to vector<2x256xf32>
    %166 = arith.mulf %163, %165 : vector<2x256xf32>
    %167 = arith.addf %162, %166 : vector<2x256xf32>
    %c243_i32 = arith.constant 243 : i32
    %168 = tpu.dynamic_rotate %27 by %c243_i32 dim 1 : vector<2x256xf32>, i32 -> vector<2x256xf32>
    %c28 = arith.constant 28 : index
    %c0_73 = arith.constant 0 : index
    %c0_74 = arith.constant 0 : index
    %169 = vector.load %arg4[%c28, %c0_73, %c0_74] : memref<49x2x256xf32, #tpu.memory_space<vmem>>, vector<1x2x256xf32>
    %170 = vector.shape_cast %169 : vector<1x2x256xf32> to vector<2x256xf32>
    %171 = arith.mulf %168, %170 : vector<2x256xf32>
    %172 = arith.addf %167, %171 : vector<2x256xf32>
    %c242_i32 = arith.constant 242 : i32
    %173 = tpu.dynamic_rotate %27 by %c242_i32 dim 1 : vector<2x256xf32>, i32 -> vector<2x256xf32>
    %c29 = arith.constant 29 : index
    %c0_75 = arith.constant 0 : index
    %c0_76 = arith.constant 0 : index
    %174 = vector.load %arg4[%c29, %c0_75, %c0_76] : memref<49x2x256xf32, #tpu.memory_space<vmem>>, vector<1x2x256xf32>
    %175 = vector.shape_cast %174 : vector<1x2x256xf32> to vector<2x256xf32>
    %176 = arith.mulf %173, %175 : vector<2x256xf32>
    %177 = arith.addf %172, %176 : vector<2x256xf32>
    %c241_i32 = arith.constant 241 : i32
    %178 = tpu.dynamic_rotate %27 by %c241_i32 dim 1 : vector<2x256xf32>, i32 -> vector<2x256xf32>
    %c30 = arith.constant 30 : index
    %c0_77 = arith.constant 0 : index
    %c0_78 = arith.constant 0 : index
    %179 = vector.load %arg4[%c30, %c0_77, %c0_78] : memref<49x2x256xf32, #tpu.memory_space<vmem>>, vector<1x2x256xf32>
    %180 = vector.shape_cast %179 : vector<1x2x256xf32> to vector<2x256xf32>
    %181 = arith.mulf %178, %180 : vector<2x256xf32>
    %182 = arith.addf %177, %181 : vector<2x256xf32>
    %c240_i32 = arith.constant 240 : i32
    %183 = tpu.dynamic_rotate %27 by %c240_i32 dim 1 : vector<2x256xf32>, i32 -> vector<2x256xf32>
    %c31 = arith.constant 31 : index
    %c0_79 = arith.constant 0 : index
    %c0_80 = arith.constant 0 : index
    %184 = vector.load %arg4[%c31, %c0_79, %c0_80] : memref<49x2x256xf32, #tpu.memory_space<vmem>>, vector<1x2x256xf32>
    %185 = vector.shape_cast %184 : vector<1x2x256xf32> to vector<2x256xf32>
    %186 = arith.mulf %183, %185 : vector<2x256xf32>
    %187 = arith.addf %182, %186 : vector<2x256xf32>
    %c239_i32 = arith.constant 239 : i32
    %188 = tpu.dynamic_rotate %27 by %c239_i32 dim 1 : vector<2x256xf32>, i32 -> vector<2x256xf32>
    %c32 = arith.constant 32 : index
    %c0_81 = arith.constant 0 : index
    %c0_82 = arith.constant 0 : index
    %189 = vector.load %arg4[%c32, %c0_81, %c0_82] : memref<49x2x256xf32, #tpu.memory_space<vmem>>, vector<1x2x256xf32>
    %190 = vector.shape_cast %189 : vector<1x2x256xf32> to vector<2x256xf32>
    %191 = arith.mulf %188, %190 : vector<2x256xf32>
    %192 = arith.addf %187, %191 : vector<2x256xf32>
    %c238_i32 = arith.constant 238 : i32
    %193 = tpu.dynamic_rotate %27 by %c238_i32 dim 1 : vector<2x256xf32>, i32 -> vector<2x256xf32>
    %c33 = arith.constant 33 : index
    %c0_83 = arith.constant 0 : index
    %c0_84 = arith.constant 0 : index
    %194 = vector.load %arg4[%c33, %c0_83, %c0_84] : memref<49x2x256xf32, #tpu.memory_space<vmem>>, vector<1x2x256xf32>
    %195 = vector.shape_cast %194 : vector<1x2x256xf32> to vector<2x256xf32>
    %196 = arith.mulf %193, %195 : vector<2x256xf32>
    %197 = arith.addf %192, %196 : vector<2x256xf32>
    %c237_i32 = arith.constant 237 : i32
    %198 = tpu.dynamic_rotate %27 by %c237_i32 dim 1 : vector<2x256xf32>, i32 -> vector<2x256xf32>
    %c34 = arith.constant 34 : index
    %c0_85 = arith.constant 0 : index
    %c0_86 = arith.constant 0 : index
    %199 = vector.load %arg4[%c34, %c0_85, %c0_86] : memref<49x2x256xf32, #tpu.memory_space<vmem>>, vector<1x2x256xf32>
    %200 = vector.shape_cast %199 : vector<1x2x256xf32> to vector<2x256xf32>
    %201 = arith.mulf %198, %200 : vector<2x256xf32>
    %202 = arith.addf %197, %201 : vector<2x256xf32>
    %c227_i32 = arith.constant 227 : i32
    %203 = tpu.dynamic_rotate %27 by %c227_i32 dim 1 : vector<2x256xf32>, i32 -> vector<2x256xf32>
    %c35 = arith.constant 35 : index
    %c0_87 = arith.constant 0 : index
    %c0_88 = arith.constant 0 : index
    %204 = vector.load %arg4[%c35, %c0_87, %c0_88] : memref<49x2x256xf32, #tpu.memory_space<vmem>>, vector<1x2x256xf32>
    %205 = vector.shape_cast %204 : vector<1x2x256xf32> to vector<2x256xf32>
    %206 = arith.mulf %203, %205 : vector<2x256xf32>
    %207 = arith.addf %202, %206 : vector<2x256xf32>
    %c226_i32 = arith.constant 226 : i32
    %208 = tpu.dynamic_rotate %27 by %c226_i32 dim 1 : vector<2x256xf32>, i32 -> vector<2x256xf32>
    %c36 = arith.constant 36 : index
    %c0_89 = arith.constant 0 : index
    %c0_90 = arith.constant 0 : index
    %209 = vector.load %arg4[%c36, %c0_89, %c0_90] : memref<49x2x256xf32, #tpu.memory_space<vmem>>, vector<1x2x256xf32>
    %210 = vector.shape_cast %209 : vector<1x2x256xf32> to vector<2x256xf32>
    %211 = arith.mulf %208, %210 : vector<2x256xf32>
    %212 = arith.addf %207, %211 : vector<2x256xf32>
    %c225_i32 = arith.constant 225 : i32
    %213 = tpu.dynamic_rotate %27 by %c225_i32 dim 1 : vector<2x256xf32>, i32 -> vector<2x256xf32>
    %c37 = arith.constant 37 : index
    %c0_91 = arith.constant 0 : index
    %c0_92 = arith.constant 0 : index
    %214 = vector.load %arg4[%c37, %c0_91, %c0_92] : memref<49x2x256xf32, #tpu.memory_space<vmem>>, vector<1x2x256xf32>
    %215 = vector.shape_cast %214 : vector<1x2x256xf32> to vector<2x256xf32>
    %216 = arith.mulf %213, %215 : vector<2x256xf32>
    %217 = arith.addf %212, %216 : vector<2x256xf32>
    %c224_i32 = arith.constant 224 : i32
    %218 = tpu.dynamic_rotate %27 by %c224_i32 dim 1 : vector<2x256xf32>, i32 -> vector<2x256xf32>
    %c38 = arith.constant 38 : index
    %c0_93 = arith.constant 0 : index
    %c0_94 = arith.constant 0 : index
    %219 = vector.load %arg4[%c38, %c0_93, %c0_94] : memref<49x2x256xf32, #tpu.memory_space<vmem>>, vector<1x2x256xf32>
    %220 = vector.shape_cast %219 : vector<1x2x256xf32> to vector<2x256xf32>
    %221 = arith.mulf %218, %220 : vector<2x256xf32>
    %222 = arith.addf %217, %221 : vector<2x256xf32>
    %c223_i32 = arith.constant 223 : i32
    %223 = tpu.dynamic_rotate %27 by %c223_i32 dim 1 : vector<2x256xf32>, i32 -> vector<2x256xf32>
    %c39 = arith.constant 39 : index
    %c0_95 = arith.constant 0 : index
    %c0_96 = arith.constant 0 : index
    %224 = vector.load %arg4[%c39, %c0_95, %c0_96] : memref<49x2x256xf32, #tpu.memory_space<vmem>>, vector<1x2x256xf32>
    %225 = vector.shape_cast %224 : vector<1x2x256xf32> to vector<2x256xf32>
    %226 = arith.mulf %223, %225 : vector<2x256xf32>
    %227 = arith.addf %222, %226 : vector<2x256xf32>
    %c222_i32 = arith.constant 222 : i32
    %228 = tpu.dynamic_rotate %27 by %c222_i32 dim 1 : vector<2x256xf32>, i32 -> vector<2x256xf32>
    %c40 = arith.constant 40 : index
    %c0_97 = arith.constant 0 : index
    %c0_98 = arith.constant 0 : index
    %229 = vector.load %arg4[%c40, %c0_97, %c0_98] : memref<49x2x256xf32, #tpu.memory_space<vmem>>, vector<1x2x256xf32>
    %230 = vector.shape_cast %229 : vector<1x2x256xf32> to vector<2x256xf32>
    %231 = arith.mulf %228, %230 : vector<2x256xf32>
    %232 = arith.addf %227, %231 : vector<2x256xf32>
    %c221_i32 = arith.constant 221 : i32
    %233 = tpu.dynamic_rotate %27 by %c221_i32 dim 1 : vector<2x256xf32>, i32 -> vector<2x256xf32>
    %c41 = arith.constant 41 : index
    %c0_99 = arith.constant 0 : index
    %c0_100 = arith.constant 0 : index
    %234 = vector.load %arg4[%c41, %c0_99, %c0_100] : memref<49x2x256xf32, #tpu.memory_space<vmem>>, vector<1x2x256xf32>
    %235 = vector.shape_cast %234 : vector<1x2x256xf32> to vector<2x256xf32>
    %236 = arith.mulf %233, %235 : vector<2x256xf32>
    %237 = arith.addf %232, %236 : vector<2x256xf32>
    %c211_i32 = arith.constant 211 : i32
    %238 = tpu.dynamic_rotate %27 by %c211_i32 dim 1 : vector<2x256xf32>, i32 -> vector<2x256xf32>
    %c42 = arith.constant 42 : index
    %c0_101 = arith.constant 0 : index
    %c0_102 = arith.constant 0 : index
    %239 = vector.load %arg4[%c42, %c0_101, %c0_102] : memref<49x2x256xf32, #tpu.memory_space<vmem>>, vector<1x2x256xf32>
    %240 = vector.shape_cast %239 : vector<1x2x256xf32> to vector<2x256xf32>
    %241 = arith.mulf %238, %240 : vector<2x256xf32>
    %242 = arith.addf %237, %241 : vector<2x256xf32>
    %c210_i32 = arith.constant 210 : i32
    %243 = tpu.dynamic_rotate %27 by %c210_i32 dim 1 : vector<2x256xf32>, i32 -> vector<2x256xf32>
    %c43 = arith.constant 43 : index
    %c0_103 = arith.constant 0 : index
    %c0_104 = arith.constant 0 : index
    %244 = vector.load %arg4[%c43, %c0_103, %c0_104] : memref<49x2x256xf32, #tpu.memory_space<vmem>>, vector<1x2x256xf32>
    %245 = vector.shape_cast %244 : vector<1x2x256xf32> to vector<2x256xf32>
    %246 = arith.mulf %243, %245 : vector<2x256xf32>
    %247 = arith.addf %242, %246 : vector<2x256xf32>
    %c209_i32 = arith.constant 209 : i32
    %248 = tpu.dynamic_rotate %27 by %c209_i32 dim 1 : vector<2x256xf32>, i32 -> vector<2x256xf32>
    %c44 = arith.constant 44 : index
    %c0_105 = arith.constant 0 : index
    %c0_106 = arith.constant 0 : index
    %249 = vector.load %arg4[%c44, %c0_105, %c0_106] : memref<49x2x256xf32, #tpu.memory_space<vmem>>, vector<1x2x256xf32>
    %250 = vector.shape_cast %249 : vector<1x2x256xf32> to vector<2x256xf32>
    %251 = arith.mulf %248, %250 : vector<2x256xf32>
    %252 = arith.addf %247, %251 : vector<2x256xf32>
    %c208_i32 = arith.constant 208 : i32
    %253 = tpu.dynamic_rotate %27 by %c208_i32 dim 1 : vector<2x256xf32>, i32 -> vector<2x256xf32>
    %c45 = arith.constant 45 : index
    %c0_107 = arith.constant 0 : index
    %c0_108 = arith.constant 0 : index
    %254 = vector.load %arg4[%c45, %c0_107, %c0_108] : memref<49x2x256xf32, #tpu.memory_space<vmem>>, vector<1x2x256xf32>
    %255 = vector.shape_cast %254 : vector<1x2x256xf32> to vector<2x256xf32>
    %256 = arith.mulf %253, %255 : vector<2x256xf32>
    %257 = arith.addf %252, %256 : vector<2x256xf32>
    %c207_i32 = arith.constant 207 : i32
    %258 = tpu.dynamic_rotate %27 by %c207_i32 dim 1 : vector<2x256xf32>, i32 -> vector<2x256xf32>
    %c46 = arith.constant 46 : index
    %c0_109 = arith.constant 0 : index
    %c0_110 = arith.constant 0 : index
    %259 = vector.load %arg4[%c46, %c0_109, %c0_110] : memref<49x2x256xf32, #tpu.memory_space<vmem>>, vector<1x2x256xf32>
    %260 = vector.shape_cast %259 : vector<1x2x256xf32> to vector<2x256xf32>
    %261 = arith.mulf %258, %260 : vector<2x256xf32>
    %262 = arith.addf %257, %261 : vector<2x256xf32>
    %c206_i32 = arith.constant 206 : i32
    %263 = tpu.dynamic_rotate %27 by %c206_i32 dim 1 : vector<2x256xf32>, i32 -> vector<2x256xf32>
    %c47 = arith.constant 47 : index
    %c0_111 = arith.constant 0 : index
    %c0_112 = arith.constant 0 : index
    %264 = vector.load %arg4[%c47, %c0_111, %c0_112] : memref<49x2x256xf32, #tpu.memory_space<vmem>>, vector<1x2x256xf32>
    %265 = vector.shape_cast %264 : vector<1x2x256xf32> to vector<2x256xf32>
    %266 = arith.mulf %263, %265 : vector<2x256xf32>
    %267 = arith.addf %262, %266 : vector<2x256xf32>
    %c205_i32 = arith.constant 205 : i32
    %268 = tpu.dynamic_rotate %27 by %c205_i32 dim 1 : vector<2x256xf32>, i32 -> vector<2x256xf32>
    %c48 = arith.constant 48 : index
    %c0_113 = arith.constant 0 : index
    %c0_114 = arith.constant 0 : index
    %269 = vector.load %arg4[%c48, %c0_113, %c0_114] : memref<49x2x256xf32, #tpu.memory_space<vmem>>, vector<1x2x256xf32>
    %270 = vector.shape_cast %269 : vector<1x2x256xf32> to vector<2x256xf32>
    %271 = arith.mulf %268, %270 : vector<2x256xf32>
    %272 = arith.addf %267, %271 : vector<2x256xf32>
    %273 = vector.extract_strided_slice %272 {offsets = [0, 0], sizes = [1, 256], strides = [1, 1]} : vector<2x256xf32> to vector<1x256xf32>
    %274 = vector.extract_strided_slice %272 {offsets = [1, 0], sizes = [1, 256], strides = [1, 1]} : vector<2x256xf32> to vector<1x256xf32>
    %275 = arith.addf %273, %274 : vector<1x256xf32>
    %276 = arith.negf %275 : vector<1x256xf32>
    %277 = math.exp %276 : vector<1x256xf32>
    %cst_115 = arith.constant 1.000000e+00 : f32
    %278 = vector.broadcast %cst_115 : f32 to vector<1x256xf32>
    %279 = arith.addf %278, %277 : vector<1x256xf32>
    %280 = arith.divf %278, %279 : vector<1x256xf32>
    %281 = vector.shape_cast %280 : vector<1x256xf32> to vector<1x1x256xf32>
    %282 = vector.broadcast %281 : vector<1x1x256xf32> to vector<1x32x256xf32>
    %283 = arith.mulf %22, %282 : vector<1x32x256xf32>
    %c0_116 = arith.constant 0 : index
    %c0_117 = arith.constant 0 : index
    %c0_118 = arith.constant 0 : index
    %284 = vector.load %arg5[%c0_116, %c0_117, %c0_118] : memref<1x32x256xf32, #tpu.memory_space<vmem>>, vector<1x32x256xf32>
    tpu.vector_store %arg5[%c0_116, %c0_117, %c0_118], %283 {strides = array<i32>} : memref<1x32x256xf32, #tpu.memory_space<vmem>>, vector<1x32x256xf32>,
    return
  }
  func.func @transform_0(%arg0: i32) -> (i32, i32, i32) {
    %c0_i32 = arith.constant 0 : i32
    %c0_i32_0 = arith.constant 0 : i32
    %c0_i32_1 = arith.constant 0 : i32
    return %arg0, %c0_i32, %c0_i32_0 : i32, i32, i32
  }
  func.func @transform_1(%arg0: i32) -> (i32, i32) {
    %c0_i32 = arith.constant 0 : i32
    %c0_i32_0 = arith.constant 0 : i32
    %c0_i32_1 = arith.constant 0 : i32
    return %c0_i32, %c0_i32_0 : i32, i32
  }
  func.func @transform_2(%arg0: i32) -> (i32, i32) {
    %c0_i32 = arith.constant 0 : i32
    %c0_i32_0 = arith.constant 0 : i32
    %c0_i32_1 = arith.constant 0 : i32
    return %c0_i32, %c0_i32_0 : i32, i32
  }
  func.func @transform_3(%arg0: i32) -> (i32, i32, i32) {
    %c0_i32 = arith.constant 0 : i32
    %c0_i32_0 = arith.constant 0 : i32
    %c0_i32_1 = arith.constant 0 : i32
    %c0_i32_2 = arith.constant 0 : i32
    return %c0_i32, %c0_i32_0, %c0_i32_1 : i32, i32, i32
  }
  func.func @transform_4(%arg0: i32) -> (i32, i32, i32) {
    %c0_i32 = arith.constant 0 : i32
    %c0_i32_0 = arith.constant 0 : i32
    %c0_i32_1 = arith.constant 0 : i32
    return %arg0, %c0_i32, %c0_i32_0 : i32, i32, i32
  }
}

</mosaic_0001>

<llo_original>
// kernel: tpu_custom_call.1
$region0: #{tpu_custom_call.1}
  #allocation0 [shape = 'u32[]', space=smem, size = 0x4, offset = 0x4, fixed_abs, tag = 'smem constant byte address 0x4 - core index']
  #allocation1 [shape = 'u32[144,128]{1,0:T(1,128)}', space=vmem, size = 0x12000, scoped, tag = 'internal scratch']
  %s0 = inlined_call_operand.vmem [shape: f32[2,32,256], index: 0, kind: input, shape index: {}]
  %s1 = inlined_call_operand.vmem [shape: f32[32,128], index: 1, kind: input, shape index: {}]
  %s2 = inlined_call_operand.vmem [shape: f32[128,32], index: 2, kind: input, shape index: {}]
  %s3 = inlined_call_operand.hbm [shape: f32[49,2,256], index: 3, kind: input, shape index: {}]
  %s4 = inlined_call_operand.hbm [shape: f32[2,32,256], index: 4, kind: output, shape index: {}]
  %s5 = sld [smem:[#allocation0]]
  $region53: #{tpu_custom_call.1} parent=0
    _
  %s7 = ssub.s32 1, %s5
  %s8 = scalar_select 0, %s7, %s5
  $region1: #{tpu_custom_call.1} parent=0
    #allocation2 [shape = 'u8[100352]{0}', space=vmem, size = 0x18800, scoped, tag = 'input window, operand 3, single buffered']
    #allocation3 [shape = 's32[2]{0}', space=sflag, size = 0x8, scoped, tag = 'scoped memory for tpu_custom_call.1']
    #allocation4 [shape = 's32[2]{0}', space=sflag, size = 0x8, scoped, tag = 'scoped memory for tpu_custom_call.1']
    #allocation5 [shape = 'u8[65536]{0}', space=vmem, size = 0x10000, scoped, tag = 'output window, operand 0']
    %9 = vsyncpa [#allocation3], 0
    %10 = vsyncpa [#allocation4], 0
    %s11 = scalar_lea.sflag [#allocation4], 1
    %12 = vsyncpa %s11, 0
    loop: start=0, step=1, limit=4
    $region2: #{tpu_custom_call.1} parent=1 // loop_pre_header
      _
    $region3: #{tpu_custom_call.1} parent=1 // loop_header
      %s14 = sphi 0, %s18
      %p15 = scmp.ge.s32.totalorder %s14, 4
      %s24 = sphi 0, %s26
      %s27 = sphi 0, %s24
      %s28 = sphi 0, %s27
      %s44 = sphi 0, %s28
      %s48 = sphi 0, %s48
      %s50 = sphi 0, %s48
      %s51 = sphi 0, %s50
      %s65 = sphi 0, %s51
      %s69 = sphi 0, %s69
      %s71 = sphi 0, %s69
      %s72 = sphi 0, %s71
      %s86 = sphi 0, %s72
      %s90 = sphi 0, %s90
      %s92 = sphi 0, %s90
      %s93 = sphi 0, %s92
      %s107 = sphi 0, %s93
      %s113 = sphi 0, %s115
      %s116 = sphi 0, %s113
      %s117 = sphi 0, %s116
      %s133 = sphi 0, %s117
    $region4: #{tpu_custom_call.1} parent=1 // loop_header_branch
      %17 = sbr.rel (%p15) target = $region8
    $region5: #{tpu_custom_call.1} parent=1 // loop_body
      %s19 = ssub.s32 %s14, 1
      %s20 = ssub.s32 %s14, 2
      %s21 = sadd.s32 %s14, 1
      %s22 = ssub.s32 %s14, %s21
      %p23 = scmp.eq.s32.totalorder %s22, 0
      %s25 = sadd.s32 %s24, 1
      %s26 = scalar_select %p23, %s24, %s25
      %p29 = pneg %p23
      %p30 = scmp.eq.s32.totalorder %s14, 1
      %p31 = por %p29, %p30
      %p32 = scmp.ne.s32.totalorder %s24, %s27
      %p33 = scmp.eq.s32.totalorder %s14, 0
      %p34 = por %p32, %p33
      %p35 = scmp.ne.s32.totalorder %s24, %s27
      %p36 = scmp.eq.s32.totalorder %s19, 1
      %p37 = por %p35, %p36
      %p38 = scmp.ne.s32.totalorder %s27, %s28
      %p39 = scmp.eq.s32.totalorder %s19, 0
      %p40 = por %p38, %p39
      %p41 = scmp.ne.s32.totalorder %s27, %s28
      %p42 = scmp.eq.s32.totalorder %s20, 1
      %p43 = por %p41, %p42
      %p45 = scmp.ne.s32.totalorder %s28, %s44
      %p46 = scmp.eq.s32.totalorder %s20, 0
      %p47 = por %p45, %p46
      %s49 = sadd.s32 %s48, 1
      %p52 = scmp.eq.s32.totalorder %s14, 1
      %p53 = scmp.ne.s32.totalorder %s48, %s50
      %p54 = scmp.eq.s32.totalorder %s14, 0
      %p55 = por %p53, %p54
      %p56 = scmp.ne.s32.totalorder %s48, %s50
      %p57 = scmp.eq.s32.totalorder %s19, 1
      %p58 = por %p56, %p57
      %p59 = scmp.ne.s32.totalorder %s50, %s51
      %p60 = scmp.eq.s32.totalorder %s19, 0
      %p61 = por %p59, %p60
      %p62 = scmp.ne.s32.totalorder %s50, %s51
      %p63 = scmp.eq.s32.totalorder %s20, 1
      %p64 = por %p62, %p63
      %p66 = scmp.ne.s32.totalorder %s51, %s65
      %p67 = scmp.eq.s32.totalorder %s20, 0
      %p68 = por %p66, %p67
      %s70 = sadd.s32 %s69, 1
      %p73 = scmp.eq.s32.totalorder %s14, 1
      %p74 = scmp.ne.s32.totalorder %s69, %s71
      %p75 = scmp.eq.s32.totalorder %s14, 0
      %p76 = por %p74, %p75
      %p77 = scmp.ne.s32.totalorder %s69, %s71
      %p78 = scmp.eq.s32.totalorder %s19, 1
      %p79 = por %p77, %p78
      %p80 = scmp.ne.s32.totalorder %s71, %s72
      %p81 = scmp.eq.s32.totalorder %s19, 0
      %p82 = por %p80, %p81
      %p83 = scmp.ne.s32.totalorder %s71, %s72
      %p84 = scmp.eq.s32.totalorder %s20, 1
      %p85 = por %p83, %p84
      %p87 = scmp.ne.s32.totalorder %s72, %s86
      %p88 = scmp.eq.s32.totalorder %s20, 0
      %p89 = por %p87, %p88
      %s91 = sadd.s32 %s90, 1
      %p94 = scmp.eq.s32.totalorder %s14, 1
      %p95 = scmp.ne.s32.totalorder %s90, %s92
      %p96 = scmp.eq.s32.totalorder %s14, 0
      %p97 = por %p95, %p96
      %p98 = scmp.ne.s32.totalorder %s90, %s92
      %p99 = scmp.eq.s32.totalorder %s19, 1
      %p100 = por %p98, %p99
      %p101 = scmp.ne.s32.totalorder %s92, %s93
      %p102 = scmp.eq.s32.totalorder %s19, 0
      %p103 = por %p101, %p102
      %p104 = scmp.ne.s32.totalorder %s92, %s93
      %p105 = scmp.eq.s32.totalorder %s20, 1
      %p106 = por %p104, %p105
      %p108 = scmp.ne.s32.totalorder %s93, %s107
      %p109 = scmp.eq.s32.totalorder %s20, 0
      %p110 = por %p108, %p109
      %s111 = ssub.s32 %s14, %s21
      %p112 = scmp.eq.s32.totalorder %s111, 0
      %s114 = sadd.s32 %s113, 1
      %s115 = scalar_select %p112, %s113, %s114
      %p118 = pneg %p112
      %p119 = scmp.eq.s32.totalorder %s14, 1
      %p120 = por %p118, %p119
      %p121 = scmp.ne.s32.totalorder %s113, %s116
      %p122 = scmp.eq.s32.totalorder %s14, 0
      %p123 = por %p121, %p122
      %p124 = scmp.ne.s32.totalorder %s113, %s116
      %p125 = scmp.eq.s32.totalorder %s19, 1
      %p126 = por %p124, %p125
      %p127 = scmp.ne.s32.totalorder %s116, %s117
      %p128 = scmp.eq.s32.totalorder %s19, 0
      %p129 = por %p127, %p128
      %p130 = scmp.ne.s32.totalorder %s116, %s117
      %p131 = scmp.eq.s32.totalorder %s20, 1
      %p132 = por %p130, %p131
      %p134 = scmp.ne.s32.totalorder %s117, %s133
      %p135 = scmp.eq.s32.totalorder %s20, 0
      %p136 = por %p134, %p135
      %p137 = scmp.le.s32.totalorder 1, %s14
      %p138 = scmp.lt.s32.totalorder %s14, 3
      %p139 = pnand %p137, %p138
      %p140 = pneg %p139
      // Predicated region
      $region9: #{tpu_custom_call.1} parent=5 // pred_check
        _
      $region10: #{tpu_custom_call.1} parent=5 // pred_check_branch
        %142 = sbr.rel (%p139) target = $region12
      $region11: #{tpu_custom_call.1} parent=5 // pred_region
        %s143 = ssub.s32 %s14, 1
        // Predicated region
        $region13: #{tpu_custom_call.1} parent=11 // pred_check
          %p144 = pneg %p61
        $region14: #{tpu_custom_call.1} parent=11 // pred_check_branch
          %146 = sbr.rel (%p144) target = $region16
        $region15: #{tpu_custom_call.1} parent=11 // pred_region
          _
        $region16: #{tpu_custom_call.1} parent=11 // pred_fallthru
          _
        // Predicated region
        $region17: #{tpu_custom_call.1} parent=11 // pred_check
          %p147 = pneg %p82
        $region18: #{tpu_custom_call.1} parent=11 // pred_check_branch
          %149 = sbr.rel (%p147) target = $region20
        $region19: #{tpu_custom_call.1} parent=11 // pred_region
          _
        $region20: #{tpu_custom_call.1} parent=11 // pred_fallthru
          _
        // Predicated region
        $region21: #{tpu_custom_call.1} parent=11 // pred_check
          %p150 = pneg %p103
        $region22: #{tpu_custom_call.1} parent=11 // pred_check_branch
          %152 = sbr.rel (%p150) target = $region24
        $region23: #{tpu_custom_call.1} parent=11 // pred_region
          %s154 = ssub.s32 3136, 3136
          %155 = vsyncadd [#allocation3], %s154
          %s156 = sshll.u32 [#allocation2], 4
          %s157 = int_to_ptr.vmem [resolvable:$true] %s156
          %162 = dma.hbm_to_vmem [thread:$0]  %s3, 3136, %s157, [#allocation3], 64, 64, 4
        $region24: #{tpu_custom_call.1} parent=11 // pred_fallthru
          _
      $region12: #{tpu_custom_call.1} parent=5 // pred_fallthru
        _
      %p163 = scmp.lt.s32.totalorder %s14, 2
      // Predicated region
      $region25: #{tpu_custom_call.1} parent=5 // pred_check
        %p164 = pneg %p163
      $region26: #{tpu_custom_call.1} parent=5 // pred_check_branch
        %166 = sbr.rel (%p164) target = $region28
      $region27: #{tpu_custom_call.1} parent=5 // pred_region
        // Predicated region
        $region29: #{tpu_custom_call.1} parent=27 // pred_check
          %p167 = pneg %p34
        $region30: #{tpu_custom_call.1} parent=27 // pred_check_branch
          %169 = sbr.rel (%p167) target = $region32
        $region31: #{tpu_custom_call.1} parent=27 // pred_region
          %p170 = scmp.lt.s32.totalorder %s14, 1
          %s171 = scalar_select %p170, %s14, 1
          %s172 = smul.addr %s171, 8
          %s173 = smul.addr %s172, 8
          %s174 = scalar_lea.vmem %s0, %s173
        $region32: #{tpu_custom_call.1} parent=27 // pred_fallthru
          _
      $region28: #{tpu_custom_call.1} parent=5 // pred_fallthru
        _
      %p175 = scmp.le.s32.totalorder 1, %s14
      %p176 = scmp.lt.s32.totalorder %s14, 3
      %p177 = pnand %p175, %p176
      %p178 = pneg %p177
      // Predicated region
      $region33: #{tpu_custom_call.1} parent=5 // pred_check
        _
      $region34: #{tpu_custom_call.1} parent=5 // pred_check_branch
        %180 = sbr.rel (%p177) target = $region36
      $region35: #{tpu_custom_call.1} parent=5 // pred_region
        %s181 = ssub.s32 %s14, 1
        // Predicated region
        $region37: #{tpu_custom_call.1} parent=35 // pred_check
          %p182 = pneg %p103
        $region38: #{tpu_custom_call.1} parent=35 // pred_check_branch
          %184 = sbr.rel (%p182) target = $region40
        $region39: #{tpu_custom_call.1} parent=35 // pred_region
          %185 = dma.done [#allocation3], 3136
        $region40: #{tpu_custom_call.1} parent=35 // pred_fallthru
          _
        %p186 = scmp.lt.s32.totalorder %s19, 1
        %s187 = scalar_select %p186, %s19, 1
        %s188 = smul.addr %s187, 8
        %s189 = smul.addr %s188, 8
        %s190 = scalar_lea.vmem %s0, %s189
        %p191 = pneg %p40
        %p192 = pneg %p37
        %p193 = pneg %p61
        %p194 = pneg %p58
        %p195 = pneg %p82
        %p196 = pneg %p79
        %p197 = pneg %p103
        %p198 = pneg %p100
        %p199 = pneg %p129
        %p200 = pneg %p126
        %s201 = sand.u32 %s116, 1
        %s202 = scalar_lea.sflag [#allocation4], %s201
        %s203 = sand.u32 %s116, 1
        %s204 = smul.addr %s203, 64
        %s205 = scalar_lea.vmem [#allocation5], %s204
        %p206 = scmp.lt.s32.totalorder %s19, 1
        %s207 = scalar_select %p206, %s19, 1
        %s208 = smul.addr %s207, 8
        %s209 = smul.addr %s208, 8
        %s210 = scalar_lea.vmem %s0, %s209
        %v211 = vld [vmem:[%s210] sm:$0xff]
        %v212 = vld [vmem:[%s210 + $0x8] sm:$0xff]
        %v213 = vld [vmem:[%s210 + $0x10] sm:$0xff]
        %v214 = vld [vmem:[%s210 + $0x18] sm:$0xff]
        %v215 = vld [vmem:[%s210 + $0x20] sm:$0xff]
        %v216 = vld [vmem:[%s210 + $0x28] sm:$0xff]
        %v217 = vld [vmem:[%s210 + $0x30] sm:$0xff]
        %v218 = vld [vmem:[%s210 + $0x38] sm:$0xff]
        %v219 = vadd.f32 %v211, %v212
        %220 = vadd.xlane.f32.xlu0 %v219
        %v221 = vpop.xlane.xlu0 %220
        %v222 = vadd.f32 %v213, %v214
        %223 = vadd.xlane.f32.xlu0 %v222
        %v224 = vpop.xlane.xlu0 %223
        %v225 = vadd.f32 %v215, %v216
        %226 = vadd.xlane.f32.xlu0 %v225
        %v227 = vpop.xlane.xlu0 %226
        %v228 = vadd.f32 %v217, %v218
        %229 = vadd.xlane.f32.xlu0 %v228
        %v230 = vpop.xlane.xlu0 %229
        %v231 = vrcp.pop 256.0
        %v232 = vmul.f32 %v221, %v231
        %v233 = vmul.f32 %v224, %v231
        %v234 = vmul.f32 %v227, %v231
        %v235 = vmul.f32 %v230, %v231
        %v236 = vmax.f32 %v211, %v212
        %237 = vmax.xlane.f32.xlu0 %v236
        %v238 = vpop.xlane.xlu0 %237
        %v239 = vmax.f32 %v213, %v214
        %240 = vmax.xlane.f32.xlu0 %v239
        %v241 = vpop.xlane.xlu0 %240
        %v242 = vmax.f32 %v215, %v216
        %243 = vmax.xlane.f32.xlu0 %v242
        %v244 = vpop.xlane.xlu0 %243
        %v245 = vmax.f32 %v217, %v218
        %246 = vmax.xlane.f32.xlu0 %v245
        %v247 = vpop.xlane.xlu0 %246
        %v252 = vlaneseq
        %v253 = vand.u32 %v252, 127
        %v254 = vlaneseq
        %v255 = vshrl.u32 %v254, 7
        %v256 = vsub.s32 %v253, %v255
        %v257 = vrot.slane %v232, %v256
        %v258 = vadd.s32 %v253, 4294967288
        %v259 = vlaneseq
        %v260 = vshrl.u32 %v259, 7
        %v261 = vsub.s32 %v258, %v260
        %v262 = vrot.slane %v233, %v261
        %vm263 = vcmask 130112
        %v264 = vsel %vm263, %v262, %v257
        %v265 = vadd.s32 %v253, 4294967280
        %v266 = vlaneseq
        %v267 = vshrl.u32 %v266, 7
        %v268 = vsub.s32 %v265, %v267
        %v269 = vrot.slane %v234, %v268
        %vm270 = vcmask 195712
        %v271 = vsel %vm270, %v269, %v264
        %v272 = vadd.s32 %v253, 4294967272
        %v273 = vlaneseq
        %v274 = vshrl.u32 %v273, 7
        %v275 = vsub.s32 %v272, %v274
        %v276 = vrot.slane %v235, %v275
        %vm277 = vcmask 261312
        %v278 = vsel %vm277, %v276, %v271
        %v284 = vlaneseq
        %v285 = vshrl.u32 %v284, 7
        %v286 = vsub.s32 %v253, %v285
        %v287 = vrot.slane %v238, %v286
        %v288 = vlaneseq
        %v289 = vshrl.u32 %v288, 7
        %v290 = vsub.s32 %v258, %v289
        %v291 = vrot.slane %v241, %v290
        %v292 = vsel %vm263, %v291, %v287
        %v293 = vlaneseq
        %v294 = vshrl.u32 %v293, 7
        %v295 = vsub.s32 %v265, %v294
        %v296 = vrot.slane %v244, %v295
        %v297 = vsel %vm270, %v296, %v292
        %v298 = vlaneseq
        %v299 = vshrl.u32 %v298, 7
        %v300 = vsub.s32 %v272, %v299
        %v301 = vrot.slane %v247, %v300
        %v302 = vsel %vm277, %v301, %v297
        %vm304 = vcmask 1040384
        %v305 = vsel %vm304, %v278, %v302
        %v306 = vld [vmem:[%s1] sm:$0xff]
        %v307 = vld [vmem:[%s1 + $0x8] sm:$0xff]
        %v308 = vld [vmem:[%s1 + $0x10] sm:$0xff]
        %v309 = vld [vmem:[%s1 + $0x18] sm:$0xff]
        %vm310 = vcmask 261120
        %v312 = vsel %vm310, %v305, 0
        %314 = vmatprep.subr.mxu0 0.0
        %315 = vmatpush1.msra.mxu0 0.0
        %316 = vmatprep.subr.mxu0 0.0
        %317 = vmatpush1.msra.mxu0 0.0
        %318 = vmatprep.subr.mxu0 0.0
        %319 = vmatpush1.msra.mxu0 0.0
        %320 = vmatprep.subr.mxu0 0.0
        %321 = vmatpush1.msra.mxu0 0.0
        %322 = vmatprep.subr.mxu0 0.0
        %323 = vmatpush1.msra.mxu0 0.0
        %324 = vmatprep.subr.mxu0 0.0
        %325 = vmatpush1.msra.mxu0 0.0
        %326 = vmatprep.subr.mxu0 0.0
        %327 = vmatpush1.msra.mxu0 0.0
        %328 = vmatprep.subr.mxu0 0.0
        %329 = vmatpush1.msra.mxu0 0.0
        %330 = vmatprep.subr.mxu0 0.0
        %331 = vmatpush1.msra.mxu0 0.0
        %332 = vmatprep.subr.mxu0 0.0
        %333 = vmatpush1.msra.mxu0 0.0
        %334 = vmatprep.subr.mxu0 0.0
        %335 = vmatpush1.msra.mxu0 0.0
        %336 = vmatprep.subr.mxu0 0.0
        %337 = vmatpush1.msra.mxu0 0.0
        %338 = vmatprep.subr.mxu0 0.0
        %339 = vmatpush1.msra.mxu0 %v309
        %340 = vmatprep.subr.mxu0 0.0
        %341 = vmatpush1.msra.mxu0 %v308
        %342 = vmatprep.subr.mxu0 0.0
        %343 = vmatpush1.msra.mxu0 %v307
        %344 = vmatprep.subr.mxu0 0.0
        %345 = vmatpush1.msra.mxu0 %v306
        %346 = vmatprep.subr.mxu0 0.0
        %347 = vmatpush2.msra.mxu0 0.0
        %348 = vmatprep.subr.mxu0 0.0
        %349 = vmatpush2.msra.mxu0 0.0
        %350 = vmatprep.subr.mxu0 0.0
        %351 = vmatpush2.msra.mxu0 0.0
        %352 = vmatprep.subr.mxu0 0.0
        %353 = vmatpush2.msra.mxu0 0.0
        %354 = vmatprep.subr.mxu0 0.0
        %355 = vmatpush2.msra.mxu0 0.0
        %356 = vmatprep.subr.mxu0 0.0
        %357 = vmatpush2.msra.mxu0 0.0
        %358 = vmatprep.subr.mxu0 0.0
        %359 = vmatpush2.msra.mxu0 0.0
        %360 = vmatprep.subr.mxu0 0.0
        %361 = vmatpush2.msra.mxu0 0.0
        %362 = vmatprep.subr.mxu0 0.0
        %363 = vmatpush2.msra.mxu0 0.0
        %364 = vmatprep.subr.mxu0 0.0
        %365 = vmatpush2.msra.mxu0 0.0
        %366 = vmatprep.subr.mxu0 0.0
        %367 = vmatpush2.msra.mxu0 0.0
        %368 = vmatprep.subr.mxu0 0.0
        %369 = vmatpush2.msra.mxu0 0.0
        %370 = vmatprep.subr.mxu0 0.0
        %371 = vmatpush2.msra.mxu0 0.0
        %372 = vmatprep.subr.mxu0 0.0
        %373 = vmatpush2.msra.mxu0 0.0
        %374 = vmatprep.subr.mxu0 0.0
        %375 = vmatpush2.msra.mxu0 0.0
        %376 = vmatprep.subr.mxu0 0.0
        %377 = vmatpush2.msra.mxu0 0.0
        %378 = vmatprep.mubr.f32.mxu0 0.0
        %379 = vmatmul.mubr.f32.gmra.mxu0 %v312
        %v380 = vpop.f32.mrf.mxu0
        %v381 = vadd.f32 0.0, %v380
        %v382 = vpop.f32.mrf.mxu0
        %383 = vdwg.mxu0
        %v384 = vmax.f32 %v381, 0.0
        %v385 = vld [vmem:[%s2] sm:$0xff]
        %v386 = vld [vmem:[%s2 + $0x8] sm:$0xff]
        %v387 = vld [vmem:[%s2 + $0x10] sm:$0xff]
        %v388 = vld [vmem:[%s2 + $0x18] sm:$0xff]
        %v389 = vld [vmem:[%s2 + $0x20] sm:$0xff]
        %v390 = vld [vmem:[%s2 + $0x28] sm:$0xff]
        %v391 = vld [vmem:[%s2 + $0x30] sm:$0xff]
        %v392 = vld [vmem:[%s2 + $0x38] sm:$0xff]
        %v393 = vld [vmem:[%s2 + $0x40] sm:$0xff]
        %v394 = vld [vmem:[%s2 + $0x48] sm:$0xff]
        %v395 = vld [vmem:[%s2 + $0x50] sm:$0xff]
        %v396 = vld [vmem:[%s2 + $0x58] sm:$0xff]
        %v397 = vld [vmem:[%s2 + $0x60] sm:$0xff]
        %v398 = vld [vmem:[%s2 + $0x68] sm:$0xff]
        %v399 = vld [vmem:[%s2 + $0x70] sm:$0xff]
        %v400 = vld [vmem:[%s2 + $0x78] sm:$0xff]
        %401 = vmatprep.subr.mxu0 0.0
        %402 = vmatpush1.msra.mxu0 %v400
        %403 = vmatprep.subr.mxu0 0.0
        %404 = vmatpush1.msra.mxu0 %v399
        %405 = vmatprep.subr.mxu0 0.0
        %406 = vmatpush1.msra.mxu0 %v398
        %407 = vmatprep.subr.mxu0 0.0
        %408 = vmatpush1.msra.mxu0 %v397
        %409 = vmatprep.subr.mxu0 0.0
        %410 = vmatpush1.msra.mxu0 %v396
        %411 = vmatprep.subr.mxu0 0.0
        %412 = vmatpush1.msra.mxu0 %v395
        %413 = vmatprep.subr.mxu0 0.0
        %414 = vmatpush1.msra.mxu0 %v394
        %415 = vmatprep.subr.mxu0 0.0
        %416 = vmatpush1.msra.mxu0 %v393
        %417 = vmatprep.subr.mxu0 0.0
        %418 = vmatpush1.msra.mxu0 %v392
        %419 = vmatprep.subr.mxu0 0.0
        %420 = vmatpush1.msra.mxu0 %v391
        %421 = vmatprep.subr.mxu0 0.0
        %422 = vmatpush1.msra.mxu0 %v390
        %423 = vmatprep.subr.mxu0 0.0
        %424 = vmatpush1.msra.mxu0 %v389
        %425 = vmatprep.subr.mxu0 0.0
        %426 = vmatpush1.msra.mxu0 %v388
        %427 = vmatprep.subr.mxu0 0.0
        %428 = vmatpush1.msra.mxu0 %v387
        %429 = vmatprep.subr.mxu0 0.0
        %430 = vmatpush1.msra.mxu0 %v386
        %431 = vmatprep.subr.mxu0 0.0
        %432 = vmatpush1.msra.mxu0 %v385
        %433 = vmatprep.subr.mxu0 0.0
        %434 = vmatpush2.msra.mxu0 0.0
        %435 = vmatprep.subr.mxu0 0.0
        %436 = vmatpush2.msra.mxu0 0.0
        %437 = vmatprep.subr.mxu0 0.0
        %438 = vmatpush2.msra.mxu0 0.0
        %439 = vmatprep.subr.mxu0 0.0
        %440 = vmatpush2.msra.mxu0 0.0
        %441 = vmatprep.subr.mxu0 0.0
        %442 = vmatpush2.msra.mxu0 0.0
        %443 = vmatprep.subr.mxu0 0.0
        %444 = vmatpush2.msra.mxu0 0.0
        %445 = vmatprep.subr.mxu0 0.0
        %446 = vmatpush2.msra.mxu0 0.0
        %447 = vmatprep.subr.mxu0 0.0
        %448 = vmatpush2.msra.mxu0 0.0
        %449 = vmatprep.subr.mxu0 0.0
        %450 = vmatpush2.msra.mxu0 0.0
        %451 = vmatprep.subr.mxu0 0.0
        %452 = vmatpush2.msra.mxu0 0.0
        %453 = vmatprep.subr.mxu0 0.0
        %454 = vmatpush2.msra.mxu0 0.0
        %455 = vmatprep.subr.mxu0 0.0
        %456 = vmatpush2.msra.mxu0 0.0
        %457 = vmatprep.subr.mxu0 0.0
        %458 = vmatpush2.msra.mxu0 0.0
        %459 = vmatprep.subr.mxu0 0.0
        %460 = vmatpush2.msra.mxu0 0.0
        %461 = vmatprep.subr.mxu0 0.0
        %462 = vmatpush2.msra.mxu0 0.0
        %463 = vmatprep.subr.mxu0 0.0
        %464 = vmatpush2.msra.mxu0 0.0
        %465 = vmatprep.mubr.f32.mxu0 0.0
        %466 = vmatmul.mubr.f32.gmra.mxu0 %v384
        %v467 = vpop.f32.mrf.mxu0
        %v468 = vadd.f32 0.0, %v467
        %v469 = vpop.f32.mrf.mxu0
        %470 = vdwg.mxu0
        %v472 = vrot.slane %v468, 1
        %v474 = vadd.f32 %v468, %v472
        %v475 = vxor.u32 %v474, 2147483648
        %v476 = vmul.f32 %v475, 1.442695
        %v477 = vpow.pop %v476
        %v478 = vadd.f32 %v477, 1.0
        %v479 = vrcp.pop %v478
        %v480 = vmul.f32 1.0, %v479
        %v481 = vlaneseq
        %v482 = vshrl.u32 %v481, 7
        %v483 = vsub.s32 0, %v482
        %v484 = vrot.slane %v480, %v483
        %486 = vbcast.lane.b32.xlu0 %v484, 256
        %v487 = vpop.permute.xlu0 %486
        %s489 = sor.u32 256, 8
        %490 = vbcast.lane.b32.xlu0 %v484, %s489
        %v491 = vpop.permute.xlu0 %490
        %s493 = sor.u32 256, 16
        %494 = vbcast.lane.b32.xlu0 %v484, %s493
        %v495 = vpop.permute.xlu0 %494
        %s497 = sor.u32 256, 24
        %498 = vbcast.lane.b32.xlu0 %v484, %s497
        %v499 = vpop.permute.xlu0 %498
        %v500 = vmul.f32 %v211, %v487
        %v501 = vmul.f32 %v212, %v487
        %v502 = vmul.f32 %v213, %v491
        %v503 = vmul.f32 %v214, %v491
        %v504 = vmul.f32 %v215, %v495
        %v505 = vmul.f32 %v216, %v495
        %v506 = vmul.f32 %v217, %v499
        %v507 = vmul.f32 %v218, %v499
        %v508 = vadd.f32 %v500, %v502
        %v509 = vadd.f32 %v508, %v504
        %v510 = vadd.f32 %v509, %v506
        %v511 = vrot.slane %v510, 4
        %v512 = vadd.f32 %v510, %v511
        %v513 = vrot.slane %v512, 2
        %v514 = vadd.f32 %v512, %v513
        %v515 = vrot.slane %v514, 1
        %v516 = vadd.f32 %v514, %v515
        %v517 = vadd.f32 %v501, %v503
        %v518 = vadd.f32 %v517, %v505
        %v519 = vadd.f32 %v518, %v507
        %v520 = vrot.slane %v519, 4
        %v521 = vadd.f32 %v519, %v520
        %v522 = vrot.slane %v521, 2
        %v523 = vadd.f32 %v521, %v522
        %v524 = vrot.slane %v523, 1
        %v525 = vadd.f32 %v523, %v524
        %v526 = vrcp.pop 32.0
        %v527 = vmul.f32 %v516, %v526
        %v528 = vmul.f32 %v525, %v526
        %v529 = vmax.f32 %v500, %v504
        %v530 = vmax.f32 %v502, %v506
        %v531 = vmax.f32 %v529, %v530
        %v532 = vrot.slane %v531, 4
        %v533 = vmax.f32 %v531, %v532
        %v534 = vrot.slane %v533, 2
        %v535 = vmax.f32 %v533, %v534
        %v536 = vrot.slane %v535, 1
        %v537 = vmax.f32 %v535, %v536
        %v538 = vmax.f32 %v501, %v505
        %v539 = vmax.f32 %v503, %v507
        %v540 = vmax.f32 %v538, %v539
        %v541 = vrot.slane %v540, 4
        %v542 = vmax.f32 %v540, %v541
        %v543 = vrot.slane %v542, 2
        %v544 = vmax.f32 %v542, %v543
        %v545 = vrot.slane %v544, 1
        %v546 = vmax.f32 %v544, %v545
        %v547 = vsel %vm304, %v527, %v537
        %v548 = vsel %vm304, %v528, %v546
        %549 = vrot.lane.b32.xlu0 %v547, 51
        %v550 = vpop.permute.xlu0 %549
        %551 = vrot.lane.b32.xlu0 %v548, 51
        %v552 = vpop.permute.xlu0 %551
        %vm553 = vcmp.lt.s32.totalorder %v253, 51
        %v554 = vsel %vm553, %v550, %v552
        %v555 = vsel %vm553, %v552, %v550
        %v556 = vld [vmem:[#allocation2] sm:$0xf]
        %v559 = vunpack.c.l.s4 1983009808
        %v560 = vunpack.c.0.s8 %v559
        %v561 = vlaneseq
        %v562 = vshrl.u32 %v561, 7
        %v563 = vsub.s32 %v560, %v562
        %v564 = vrot.slane %v556, %v563
        %v565 = vcombine.high %v564, %v564
        %v568 = vmul.f32 %v555, %v564
        %v569 = vmul.f32 %v554, %v565
        %v570 = vadd.f32 %v568, 0.0
        %v571 = vadd.f32 %v569, 0.0
        %572 = vrot.lane.b32.xlu0 %v547, 50
        %v573 = vpop.permute.xlu0 %572
        %574 = vrot.lane.b32.xlu0 %v548, 50
        %v575 = vpop.permute.xlu0 %574
        %vm576 = vcmp.lt.s32.totalorder %v253, 50
        %v577 = vsel %vm576, %v573, %v575
        %v578 = vsel %vm576, %v575, %v573
        %s579 = scalar_lea.vmem [#allocation2], 4
        %v580 = vld [vmem:[%s579] sm:$0xf]
        %v583 = vunpack.c.l.s4 1983009808
        %v584 = vunpack.c.0.s8 %v583
        %v585 = vlaneseq
        %v586 = vshrl.u32 %v585, 7
        %v587 = vsub.s32 %v584, %v586
        %v588 = vrot.slane %v580, %v587
        %v589 = vcombine.high %v588, %v588
        %v592 = vmul.f32 %v578, %v588
        %v593 = vmul.f32 %v577, %v589
        %v594 = vadd.f32 %v570, %v592
        %v595 = vadd.f32 %v571, %v593
        %596 = vrot.lane.b32.xlu0 %v547, 49
        %v597 = vpop.permute.xlu0 %596
        %598 = vrot.lane.b32.xlu0 %v548, 49
        %v599 = vpop.permute.xlu0 %598
        %vm600 = vcmp.lt.s32.totalorder %v253, 49
        %v601 = vsel %vm600, %v597, %v599
        %v602 = vsel %vm600, %v599, %v597
        %s603 = scalar_lea.vmem [#allocation2], 8
        %v604 = vld [vmem:[%s603] sm:$0xf]
        %v607 = vunpack.c.l.s4 1983009808
        %v608 = vunpack.c.0.s8 %v607
        %v609 = vlaneseq
        %v610 = vshrl.u32 %v609, 7
        %v611 = vsub.s32 %v608, %v610
        %v612 = vrot.slane %v604, %v611
        %v613 = vcombine.high %v612, %v612
        %v616 = vmul.f32 %v602, %v612
        %v617 = vmul.f32 %v601, %v613
        %v618 = vadd.f32 %v594, %v616
        %v619 = vadd.f32 %v595, %v617
        %620 = vrot.lane.b32.xlu0 %v547, 48
        %v621 = vpop.permute.xlu0 %620
        %622 = vrot.lane.b32.xlu0 %v548, 48
        %v623 = vpop.permute.xlu0 %622
        %vm624 = vcmp.lt.s32.totalorder %v253, 48
        %v625 = vsel %vm624, %v621, %v623
        %v626 = vsel %vm624, %v623, %v621
        %s627 = scalar_lea.vmem [#allocation2], 12
        %v628 = vld [vmem:[%s627] sm:$0xf]
        %v631 = vunpack.c.l.s4 1983009808
        %v632 = vunpack.c.0.s8 %v631
        %v633 = vlaneseq
        %v634 = vshrl.u32 %v633, 7
        %v635 = vsub.s32 %v632, %v634
        %v636 = vrot.slane %v628, %v635
        %v637 = vcombine.high %v636, %v636
        %v640 = vmul.f32 %v626, %v636
        %v641 = vmul.f32 %v625, %v637
        %v642 = vadd.f32 %v618, %v640
        %v643 = vadd.f32 %v619, %v641
        %644 = vrot.lane.b32.xlu0 %v547, 47
        %v645 = vpop.permute.xlu0 %644
        %646 = vrot.lane.b32.xlu0 %v548, 47
        %v647 = vpop.permute.xlu0 %646
        %vm648 = vcmp.lt.s32.totalorder %v253, 47
        %v649 = vsel %vm648, %v645, %v647
        %v650 = vsel %vm648, %v647, %v645
        %s651 = scalar_lea.vmem [#allocation2], 16
        %v652 = vld [vmem:[%s651] sm:$0xf]
        %v655 = vunpack.c.l.s4 1983009808
        %v656 = vunpack.c.0.s8 %v655
        %v657 = vlaneseq
        %v658 = vshrl.u32 %v657, 7
        %v659 = vsub.s32 %v656, %v658
        %v660 = vrot.slane %v652, %v659
        %v661 = vcombine.high %v660, %v660
        %v664 = vmul.f32 %v650, %v660
        %v665 = vmul.f32 %v649, %v661
        %v666 = vadd.f32 %v642, %v664
        %v667 = vadd.f32 %v643, %v665
        %668 = vrot.lane.b32.xlu0 %v547, 46
        %v669 = vpop.permute.xlu0 %668
        %670 = vrot.lane.b32.xlu0 %v548, 46
        %v671 = vpop.permute.xlu0 %670
        %vm672 = vcmp.lt.s32.totalorder %v253, 46
        %v673 = vsel %vm672, %v669, %v671
        %v674 = vsel %vm672, %v671, %v669
        %s675 = scalar_lea.vmem [#allocation2], 20
        %v676 = vld [vmem:[%s675] sm:$0xf]
        %v679 = vunpack.c.l.s4 1983009808
        %v680 = vunpack.c.0.s8 %v679
        %v681 = vlaneseq
        %v682 = vshrl.u32 %v681, 7
        %v683 = vsub.s32 %v680, %v682
        %v684 = vrot.slane %v676, %v683
        %v685 = vcombine.high %v684, %v684
        %v688 = vmul.f32 %v674, %v684
        %v689 = vmul.f32 %v673, %v685
        %v690 = vadd.f32 %v666, %v688
        %v691 = vadd.f32 %v667, %v689
        %692 = vrot.lane.b32.xlu0 %v547, 45
        %v693 = vpop.permute.xlu0 %692
        %694 = vrot.lane.b32.xlu0 %v548, 45
        %v695 = vpop.permute.xlu0 %694
        %vm696 = vcmp.lt.s32.totalorder %v253, 45
        %v697 = vsel %vm696, %v693, %v695
        %v698 = vsel %vm696, %v695, %v693
        %s699 = scalar_lea.vmem [#allocation2], 24
        %v700 = vld [vmem:[%s699] sm:$0xf]
        %v703 = vunpack.c.l.s4 1983009808
        %v704 = vunpack.c.0.s8 %v703
        %v705 = vlaneseq
        %v706 = vshrl.u32 %v705, 7
        %v707 = vsub.s32 %v704, %v706
        %v708 = vrot.slane %v700, %v707
        %v709 = vcombine.high %v708, %v708
        %v712 = vmul.f32 %v698, %v708
        %v713 = vmul.f32 %v697, %v709
        %v714 = vadd.f32 %v690, %v712
        %v715 = vadd.f32 %v691, %v713
        %716 = vrot.lane.b32.xlu0 %v547, 35
        %v717 = vpop.permute.xlu0 %716
        %718 = vrot.lane.b32.xlu0 %v548, 35
        %v719 = vpop.permute.xlu0 %718
        %vm720 = vcmp.lt.s32.totalorder %v253, 35
        %v721 = vsel %vm720, %v717, %v719
        %v722 = vsel %vm720, %v719, %v717
        %s723 = scalar_lea.vmem [#allocation2], 28
        %v724 = vld [vmem:[%s723] sm:$0xf]
        %v727 = vunpack.c.l.s4 1983009808
        %v728 = vunpack.c.0.s8 %v727
        %v729 = vlaneseq
        %v730 = vshrl.u32 %v729, 7
        %v731 = vsub.s32 %v728, %v730
        %v732 = vrot.slane %v724, %v731
        %v733 = vcombine.high %v732, %v732
        %v736 = vmul.f32 %v722, %v732
        %v737 = vmul.f32 %v721, %v733
        %v738 = vadd.f32 %v714, %v736
        %v739 = vadd.f32 %v715, %v737
        %740 = vrot.lane.b32.xlu0 %v547, 34
        %v741 = vpop.permute.xlu0 %740
        %742 = vrot.lane.b32.xlu0 %v548, 34
        %v743 = vpop.permute.xlu0 %742
        %vm744 = vcmp.lt.s32.totalorder %v253, 34
        %v745 = vsel %vm744, %v741, %v743
        %v746 = vsel %vm744, %v743, %v741
        %s747 = scalar_lea.vmem [#allocation2], 32
        %v748 = vld [vmem:[%s747] sm:$0xf]
        %v751 = vunpack.c.l.s4 1983009808
        %v752 = vunpack.c.0.s8 %v751
        %v753 = vlaneseq
        %v754 = vshrl.u32 %v753, 7
        %v755 = vsub.s32 %v752, %v754
        %v756 = vrot.slane %v748, %v755
        %v757 = vcombine.high %v756, %v756
        %v760 = vmul.f32 %v746, %v756
        %v761 = vmul.f32 %v745, %v757
        %v762 = vadd.f32 %v738, %v760
        %v763 = vadd.f32 %v739, %v761
        %764 = vrot.lane.b32.xlu0 %v547, 33
        %v765 = vpop.permute.xlu0 %764
        %766 = vrot.lane.b32.xlu0 %v548, 33
        %v767 = vpop.permute.xlu0 %766
        %vm768 = vcmp.lt.s32.totalorder %v253, 33
        %v769 = vsel %vm768, %v765, %v767
        %v770 = vsel %vm768, %v767, %v765
        %s771 = scalar_lea.vmem [#allocation2], 36
        %v772 = vld [vmem:[%s771] sm:$0xf]
        %v775 = vunpack.c.l.s4 1983009808
        %v776 = vunpack.c.0.s8 %v775
        %v777 = vlaneseq
        %v778 = vshrl.u32 %v777, 7
        %v779 = vsub.s32 %v776, %v778
        %v780 = vrot.slane %v772, %v779
        %v781 = vcombine.high %v780, %v780
        %v784 = vmul.f32 %v770, %v780
        %v785 = vmul.f32 %v769, %v781
        %v786 = vadd.f32 %v762, %v784
        %v787 = vadd.f32 %v763, %v785
        %788 = vrot.lane.b32.xlu0 %v547, 32
        %v789 = vpop.permute.xlu0 %788
        %790 = vrot.lane.b32.xlu0 %v548, 32
        %v791 = vpop.permute.xlu0 %790
        %vm792 = vcmp.lt.s32.totalorder %v253, 32
        %v793 = vsel %vm792, %v789, %v791
        %v794 = vsel %vm792, %v791, %v789
        %s795 = scalar_lea.vmem [#allocation2], 40
        %v796 = vld [vmem:[%s795] sm:$0xf]
        %v799 = vunpack.c.l.s4 1983009808
        %v800 = vunpack.c.0.s8 %v799
        %v801 = vlaneseq
        %v802 = vshrl.u32 %v801, 7
        %v803 = vsub.s32 %v800, %v802
        %v804 = vrot.slane %v796, %v803
        %v805 = vcombine.high %v804, %v804
        %v808 = vmul.f32 %v794, %v804
        %v809 = vmul.f32 %v793, %v805
        %v810 = vadd.f32 %v786, %v808
        %v811 = vadd.f32 %v787, %v809
        %812 = vrot.lane.b32.xlu0 %v547, 31
        %v813 = vpop.permute.xlu0 %812
        %814 = vrot.lane.b32.xlu0 %v548, 31
        %v815 = vpop.permute.xlu0 %814
        %vm816 = vcmp.lt.s32.totalorder %v253, 31
        %v817 = vsel %vm816, %v813, %v815
        %v818 = vsel %vm816, %v815, %v813
        %s819 = scalar_lea.vmem [#allocation2], 44
        %v820 = vld [vmem:[%s819] sm:$0xf]
        %v823 = vunpack.c.l.s4 1983009808
        %v824 = vunpack.c.0.s8 %v823
        %v825 = vlaneseq
        %v826 = vshrl.u32 %v825, 7
        %v827 = vsub.s32 %v824, %v826
        %v828 = vrot.slane %v820, %v827
        %v829 = vcombine.high %v828, %v828
        %v832 = vmul.f32 %v818, %v828
        %v833 = vmul.f32 %v817, %v829
        %v834 = vadd.f32 %v810, %v832
        %v835 = vadd.f32 %v811, %v833
        %836 = vrot.lane.b32.xlu0 %v547, 30
        %v837 = vpop.permute.xlu0 %836
        %838 = vrot.lane.b32.xlu0 %v548, 30
        %v839 = vpop.permute.xlu0 %838
        %vm840 = vcmp.lt.s32.totalorder %v253, 30
        %v841 = vsel %vm840, %v837, %v839
        %v842 = vsel %vm840, %v839, %v837
        %s843 = scalar_lea.vmem [#allocation2], 48
        %v844 = vld [vmem:[%s843] sm:$0xf]
        %v847 = vunpack.c.l.s4 1983009808
        %v848 = vunpack.c.0.s8 %v847
        %v849 = vlaneseq
        %v850 = vshrl.u32 %v849, 7
        %v851 = vsub.s32 %v848, %v850
        %v852 = vrot.slane %v844, %v851
        %v853 = vcombine.high %v852, %v852
        %v856 = vmul.f32 %v842, %v852
        %v857 = vmul.f32 %v841, %v853
        %v858 = vadd.f32 %v834, %v856
        %v859 = vadd.f32 %v835, %v857
        %860 = vrot.lane.b32.xlu0 %v547, 29
        %v861 = vpop.permute.xlu0 %860
        %862 = vrot.lane.b32.xlu0 %v548, 29
        %v863 = vpop.permute.xlu0 %862
        %vm864 = vcmp.lt.s32.totalorder %v253, 29
        %v865 = vsel %vm864, %v861, %v863
        %v866 = vsel %vm864, %v863, %v861
        %s867 = scalar_lea.vmem [#allocation2], 52
        %v868 = vld [vmem:[%s867] sm:$0xf]
        %v871 = vunpack.c.l.s4 1983009808
        %v872 = vunpack.c.0.s8 %v871
        %v873 = vlaneseq
        %v874 = vshrl.u32 %v873, 7
        %v875 = vsub.s32 %v872, %v874
        %v876 = vrot.slane %v868, %v875
        %v877 = vcombine.high %v876, %v876
        %v880 = vmul.f32 %v866, %v876
        %v881 = vmul.f32 %v865, %v877
        %v882 = vadd.f32 %v858, %v880
        %v883 = vadd.f32 %v859, %v881
        %884 = vrot.lane.b32.xlu0 %v547, 19
        %v885 = vpop.permute.xlu0 %884
        %886 = vrot.lane.b32.xlu0 %v548, 19
        %v887 = vpop.permute.xlu0 %886
        %vm888 = vcmp.lt.s32.totalorder %v253, 19
        %v889 = vsel %vm888, %v885, %v887
        %v890 = vsel %vm888, %v887, %v885
        %s891 = scalar_lea.vmem [#allocation2], 56
        %v892 = vld [vmem:[%s891] sm:$0xf]
        %v895 = vunpack.c.l.s4 1983009808
        %v896 = vunpack.c.0.s8 %v895
        %v897 = vlaneseq
        %v898 = vshrl.u32 %v897, 7
        %v899 = vsub.s32 %v896, %v898
        %v900 = vrot.slane %v892, %v899
        %v901 = vcombine.high %v900, %v900
        %v904 = vmul.f32 %v890, %v900
        %v905 = vmul.f32 %v889, %v901
        %v906 = vadd.f32 %v882, %v904
        %v907 = vadd.f32 %v883, %v905
        %908 = vrot.lane.b32.xlu0 %v547, 18
        %v909 = vpop.permute.xlu0 %908
        %910 = vrot.lane.b32.xlu0 %v548, 18
        %v911 = vpop.permute.xlu0 %910
        %vm912 = vcmp.lt.s32.totalorder %v253, 18
        %v913 = vsel %vm912, %v909, %v911
        %v914 = vsel %vm912, %v911, %v909
        %s915 = scalar_lea.vmem [#allocation2], 60
        %v916 = vld [vmem:[%s915] sm:$0xf]
        %v919 = vunpack.c.l.s4 1983009808
        %v920 = vunpack.c.0.s8 %v919
        %v921 = vlaneseq
        %v922 = vshrl.u32 %v921, 7
        %v923 = vsub.s32 %v920, %v922
        %v924 = vrot.slane %v916, %v923
        %v925 = vcombine.high %v924, %v924
        %v928 = vmul.f32 %v914, %v924
        %v929 = vmul.f32 %v913, %v925
        %v930 = vadd.f32 %v906, %v928
        %v931 = vadd.f32 %v907, %v929
        %932 = vrot.lane.b32.xlu0 %v547, 17
        %v933 = vpop.permute.xlu0 %932
        %934 = vrot.lane.b32.xlu0 %v548, 17
        %v935 = vpop.permute.xlu0 %934
        %vm936 = vcmp.lt.s32.totalorder %v253, 17
        %v937 = vsel %vm936, %v933, %v935
        %v938 = vsel %vm936, %v935, %v933
        %s939 = scalar_lea.vmem [#allocation2], 64
        %v940 = vld [vmem:[%s939] sm:$0xf]
        %v943 = vunpack.c.l.s4 1983009808
        %v944 = vunpack.c.0.s8 %v943
        %v945 = vlaneseq
        %v946 = vshrl.u32 %v945, 7
        %v947 = vsub.s32 %v944, %v946
        %v948 = vrot.slane %v940, %v947
        %v949 = vcombine.high %v948, %v948
        %v952 = vmul.f32 %v938, %v948
        %v953 = vmul.f32 %v937, %v949
        %v954 = vadd.f32 %v930, %v952
        %v955 = vadd.f32 %v931, %v953
        %956 = vrot.lane.b32.xlu0 %v547, 16
        %v957 = vpop.permute.xlu0 %956
        %958 = vrot.lane.b32.xlu0 %v548, 16
        %v959 = vpop.permute.xlu0 %958
        %vm960 = vcmp.lt.s32.totalorder %v253, 16
        %v961 = vsel %vm960, %v957, %v959
        %v962 = vsel %vm960, %v959, %v957
        %s963 = scalar_lea.vmem [#allocation2], 68
        %v964 = vld [vmem:[%s963] sm:$0xf]
        %v967 = vunpack.c.l.s4 1983009808
        %v968 = vunpack.c.0.s8 %v967
        %v969 = vlaneseq
        %v970 = vshrl.u32 %v969, 7
        %v971 = vsub.s32 %v968, %v970
        %v972 = vrot.slane %v964, %v971
        %v973 = vcombine.high %v972, %v972
        %v976 = vmul.f32 %v962, %v972
        %v977 = vmul.f32 %v961, %v973
        %v978 = vadd.f32 %v954, %v976
        %v979 = vadd.f32 %v955, %v977
        %980 = vrot.lane.b32.xlu0 %v547, 15
        %v981 = vpop.permute.xlu0 %980
        %982 = vrot.lane.b32.xlu0 %v548, 15
        %v983 = vpop.permute.xlu0 %982
        %vm984 = vcmp.lt.s32.totalorder %v253, 15
        %v985 = vsel %vm984, %v981, %v983
        %v986 = vsel %vm984, %v983, %v981
        %s987 = scalar_lea.vmem [#allocation2], 72
        %v988 = vld [vmem:[%s987] sm:$0xf]
        %v991 = vunpack.c.l.s4 1983009808
        %v992 = vunpack.c.0.s8 %v991
        %v993 = vlaneseq
        %v994 = vshrl.u32 %v993, 7
        %v995 = vsub.s32 %v992, %v994
        %v996 = vrot.slane %v988, %v995
        %v997 = vcombine.high %v996, %v996
        %v1000 = vmul.f32 %v986, %v996
        %v1001 = vmul.f32 %v985, %v997
        %v1002 = vadd.f32 %v978, %v1000
        %v1003 = vadd.f32 %v979, %v1001
        %1004 = vrot.lane.b32.xlu0 %v547, 14
        %v1005 = vpop.permute.xlu0 %1004
        %1006 = vrot.lane.b32.xlu0 %v548, 14
        %v1007 = vpop.permute.xlu0 %1006
        %vm1008 = vcmp.lt.s32.totalorder %v253, 14
        %v1009 = vsel %vm1008, %v1005, %v1007
        %v1010 = vsel %vm1008, %v1007, %v1005
        %s1011 = scalar_lea.vmem [#allocation2], 76
        %v1012 = vld [vmem:[%s1011] sm:$0xf]
        %v1015 = vunpack.c.l.s4 1983009808
        %v1016 = vunpack.c.0.s8 %v1015
        %v1017 = vlaneseq
        %v1018 = vshrl.u32 %v1017, 7
        %v1019 = vsub.s32 %v1016, %v1018
        %v1020 = vrot.slane %v1012, %v1019
        %v1021 = vcombine.high %v1020, %v1020
        %v1024 = vmul.f32 %v1010, %v1020
        %v1025 = vmul.f32 %v1009, %v1021
        %v1026 = vadd.f32 %v1002, %v1024
        %v1027 = vadd.f32 %v1003, %v1025
        %1028 = vrot.lane.b32.xlu0 %v547, 13
        %v1029 = vpop.permute.xlu0 %1028
        %1030 = vrot.lane.b32.xlu0 %v548, 13
        %v1031 = vpop.permute.xlu0 %1030
        %vm1032 = vcmp.lt.s32.totalorder %v253, 13
        %v1033 = vsel %vm1032, %v1029, %v1031
        %v1034 = vsel %vm1032, %v1031, %v1029
        %s1035 = scalar_lea.vmem [#allocation2], 80
        %v1036 = vld [vmem:[%s1035] sm:$0xf]
        %v1039 = vunpack.c.l.s4 1983009808
        %v1040 = vunpack.c.0.s8 %v1039
        %v1041 = vlaneseq
        %v1042 = vshrl.u32 %v1041, 7
        %v1043 = vsub.s32 %v1040, %v1042
        %v1044 = vrot.slane %v1036, %v1043
        %v1045 = vcombine.high %v1044, %v1044
        %v1048 = vmul.f32 %v1034, %v1044
        %v1049 = vmul.f32 %v1033, %v1045
        %v1050 = vadd.f32 %v1026, %v1048
        %v1051 = vadd.f32 %v1027, %v1049
        %1052 = vrot.lane.b32.xlu0 %v547, 3
        %v1053 = vpop.permute.xlu0 %1052
        %1054 = vrot.lane.b32.xlu0 %v548, 3
        %v1055 = vpop.permute.xlu0 %1054
        %vm1056 = vcmp.lt.s32.totalorder %v253, 3
        %v1057 = vsel %vm1056, %v1053, %v1055
        %v1058 = vsel %vm1056, %v1055, %v1053
        %s1059 = scalar_lea.vmem [#allocation2], 84
        %v1060 = vld [vmem:[%s1059] sm:$0xf]
        %v1063 = vunpack.c.l.s4 1983009808
        %v1064 = vunpack.c.0.s8 %v1063
        %v1065 = vlaneseq
        %v1066 = vshrl.u32 %v1065, 7
        %v1067 = vsub.s32 %v1064, %v1066
        %v1068 = vrot.slane %v1060, %v1067
        %v1069 = vcombine.high %v1068, %v1068
        %v1072 = vmul.f32 %v1058, %v1068
        %v1073 = vmul.f32 %v1057, %v1069
        %v1074 = vadd.f32 %v1050, %v1072
        %v1075 = vadd.f32 %v1051, %v1073
        %1076 = vrot.lane.b32.xlu0 %v547, 2
        %v1077 = vpop.permute.xlu0 %1076
        %1078 = vrot.lane.b32.xlu0 %v548, 2
        %v1079 = vpop.permute.xlu0 %1078
        %vm1080 = vcmp.lt.s32.totalorder %v253, 2
        %v1081 = vsel %vm1080, %v1077, %v1079
        %v1082 = vsel %vm1080, %v1079, %v1077
        %s1083 = scalar_lea.vmem [#allocation2], 88
        %v1084 = vld [vmem:[%s1083] sm:$0xf]
        %v1087 = vunpack.c.l.s4 1983009808
        %v1088 = vunpack.c.0.s8 %v1087
        %v1089 = vlaneseq
        %v1090 = vshrl.u32 %v1089, 7
        %v1091 = vsub.s32 %v1088, %v1090
        %v1092 = vrot.slane %v1084, %v1091
        %v1093 = vcombine.high %v1092, %v1092
        %v1096 = vmul.f32 %v1082, %v1092
        %v1097 = vmul.f32 %v1081, %v1093
        %v1098 = vadd.f32 %v1074, %v1096
        %v1099 = vadd.f32 %v1075, %v1097
        %1100 = vrot.lane.b32.xlu0 %v547, 1
        %v1101 = vpop.permute.xlu0 %1100
        %1102 = vrot.lane.b32.xlu0 %v548, 1
        %v1103 = vpop.permute.xlu0 %1102
        %vm1104 = vcmp.lt.s32.totalorder %v253, 1
        %v1105 = vsel %vm1104, %v1101, %v1103
        %v1106 = vsel %vm1104, %v1103, %v1101
        %s1107 = scalar_lea.vmem [#allocation2], 92
        %v1108 = vld [vmem:[%s1107] sm:$0xf]
        %v1111 = vunpack.c.l.s4 1983009808
        %v1112 = vunpack.c.0.s8 %v1111
        %v1113 = vlaneseq
        %v1114 = vshrl.u32 %v1113, 7
        %v1115 = vsub.s32 %v1112, %v1114
        %v1116 = vrot.slane %v1108, %v1115
        %v1117 = vcombine.high %v1116, %v1116
        %v1120 = vmul.f32 %v1106, %v1116
        %v1121 = vmul.f32 %v1105, %v1117
        %v1122 = vadd.f32 %v1098, %v1120
        %v1123 = vadd.f32 %v1099, %v1121
        %s1124 = scalar_lea.vmem [#allocation2], 96
        %v1125 = vld [vmem:[%s1124] sm:$0xf]
        %v1128 = vunpack.c.l.s4 1983009808
        %v1129 = vunpack.c.0.s8 %v1128
        %v1130 = vlaneseq
        %v1131 = vshrl.u32 %v1130, 7
        %v1132 = vsub.s32 %v1129, %v1131
        %v1133 = vrot.slane %v1125, %v1132
        %v1134 = vcombine.high %v1133, %v1133
        %v1137 = vmul.f32 %v547, %v1133
        %v1138 = vmul.f32 %v548, %v1134
        %v1139 = vadd.f32 %v1122, %v1137
        %v1140 = vadd.f32 %v1123, %v1138
        %1141 = vrot.lane.b32.xlu0 %v547, 127
        %v1142 = vpop.permute.xlu0 %1141
        %1143 = vrot.lane.b32.xlu0 %v548, 127
        %v1144 = vpop.permute.xlu0 %1143
        %vm1145 = vcmp.lt.s32.totalorder %v253, 127
        %v1146 = vsel %vm1145, %v1142, %v1144
        %v1147 = vsel %vm1145, %v1144, %v1142
        %s1148 = scalar_lea.vmem [#allocation2], 100
        %v1149 = vld [vmem:[%s1148] sm:$0xf]
        %v1152 = vunpack.c.l.s4 1983009808
        %v1153 = vunpack.c.0.s8 %v1152
        %v1154 = vlaneseq
        %v1155 = vshrl.u32 %v1154, 7
        %v1156 = vsub.s32 %v1153, %v1155
        %v1157 = vrot.slane %v1149, %v1156
        %v1158 = vcombine.high %v1157, %v1157
        %v1161 = vmul.f32 %v1146, %v1157
        %v1162 = vmul.f32 %v1147, %v1158
        %v1163 = vadd.f32 %v1139, %v1161
        %v1164 = vadd.f32 %v1140, %v1162
        %1165 = vrot.lane.b32.xlu0 %v547, 126
        %v1166 = vpop.permute.xlu0 %1165
        %1167 = vrot.lane.b32.xlu0 %v548, 126
        %v1168 = vpop.permute.xlu0 %1167
        %vm1169 = vcmp.lt.s32.totalorder %v253, 126
        %v1170 = vsel %vm1169, %v1166, %v1168
        %v1171 = vsel %vm1169, %v1168, %v1166
        %s1172 = scalar_lea.vmem [#allocation2], 104
        %v1173 = vld [vmem:[%s1172] sm:$0xf]
        %v1176 = vunpack.c.l.s4 1983009808
        %v1177 = vunpack.c.0.s8 %v1176
        %v1178 = vlaneseq
        %v1179 = vshrl.u32 %v1178, 7
        %v1180 = vsub.s32 %v1177, %v1179
        %v1181 = vrot.slane %v1173, %v1180
        %v1182 = vcombine.high %v1181, %v1181
        %v1185 = vmul.f32 %v1170, %v1181
        %v1186 = vmul.f32 %v1171, %v1182
        %v1187 = vadd.f32 %v1163, %v1185
        %v1188 = vadd.f32 %v1164, %v1186
        %1189 = vrot.lane.b32.xlu0 %v547, 125
        %v1190 = vpop.permute.xlu0 %1189
        %1191 = vrot.lane.b32.xlu0 %v548, 125
        %v1192 = vpop.permute.xlu0 %1191
        %vm1193 = vcmp.lt.s32.totalorder %v253, 125
        %v1194 = vsel %vm1193, %v1190, %v1192
        %v1195 = vsel %vm1193, %v1192, %v1190
        %s1196 = scalar_lea.vmem [#allocation2], 108
        %v1197 = vld [vmem:[%s1196] sm:$0xf]
        %v1200 = vunpack.c.l.s4 1983009808
        %v1201 = vunpack.c.0.s8 %v1200
        %v1202 = vlaneseq
        %v1203 = vshrl.u32 %v1202, 7
        %v1204 = vsub.s32 %v1201, %v1203
        %v1205 = vrot.slane %v1197, %v1204
        %v1206 = vcombine.high %v1205, %v1205
        %v1209 = vmul.f32 %v1194, %v1205
        %v1210 = vmul.f32 %v1195, %v1206
        %v1211 = vadd.f32 %v1187, %v1209
        %v1212 = vadd.f32 %v1188, %v1210
        %1213 = vrot.lane.b32.xlu0 %v547, 115
        %v1214 = vpop.permute.xlu0 %1213
        %1215 = vrot.lane.b32.xlu0 %v548, 115
        %v1216 = vpop.permute.xlu0 %1215
        %vm1217 = vcmp.lt.s32.totalorder %v253, 115
        %v1218 = vsel %vm1217, %v1214, %v1216
        %v1219 = vsel %vm1217, %v1216, %v1214
        %s1220 = scalar_lea.vmem [#allocation2], 112
        %v1221 = vld [vmem:[%s1220] sm:$0xf]
        %v1224 = vunpack.c.l.s4 1983009808
        %v1225 = vunpack.c.0.s8 %v1224
        %v1226 = vlaneseq
        %v1227 = vshrl.u32 %v1226, 7
        %v1228 = vsub.s32 %v1225, %v1227
        %v1229 = vrot.slane %v1221, %v1228
        %v1230 = vcombine.high %v1229, %v1229
        %v1233 = vmul.f32 %v1218, %v1229
        %v1234 = vmul.f32 %v1219, %v1230
        %v1235 = vadd.f32 %v1211, %v1233
        %v1236 = vadd.f32 %v1212, %v1234
        %1237 = vrot.lane.b32.xlu0 %v547, 114
        %v1238 = vpop.permute.xlu0 %1237
        %1239 = vrot.lane.b32.xlu0 %v548, 114
        %v1240 = vpop.permute.xlu0 %1239
        %vm1241 = vcmp.lt.s32.totalorder %v253, 114
        %v1242 = vsel %vm1241, %v1238, %v1240
        %v1243 = vsel %vm1241, %v1240, %v1238
        %s1244 = scalar_lea.vmem [#allocation2], 116
        %v1245 = vld [vmem:[%s1244] sm:$0xf]
        %v1248 = vunpack.c.l.s4 1983009808
        %v1249 = vunpack.c.0.s8 %v1248
        %v1250 = vlaneseq
        %v1251 = vshrl.u32 %v1250, 7
        %v1252 = vsub.s32 %v1249, %v1251
        %v1253 = vrot.slane %v1245, %v1252
        %v1254 = vcombine.high %v1253, %v1253
        %v1257 = vmul.f32 %v1242, %v1253
        %v1258 = vmul.f32 %v1243, %v1254
        %v1259 = vadd.f32 %v1235, %v1257
        %v1260 = vadd.f32 %v1236, %v1258
        %1261 = vrot.lane.b32.xlu0 %v547, 113
        %v1262 = vpop.permute.xlu0 %1261
        %1263 = vrot.lane.b32.xlu0 %v548, 113
        %v1264 = vpop.permute.xlu0 %1263
        %vm1265 = vcmp.lt.s32.totalorder %v253, 113
        %v1266 = vsel %vm1265, %v1262, %v1264
        %v1267 = vsel %vm1265, %v1264, %v1262
        %s1268 = scalar_lea.vmem [#allocation2], 120
        %v1269 = vld [vmem:[%s1268] sm:$0xf]
        %v1272 = vunpack.c.l.s4 1983009808
        %v1273 = vunpack.c.0.s8 %v1272
        %v1274 = vlaneseq
        %v1275 = vshrl.u32 %v1274, 7
        %v1276 = vsub.s32 %v1273, %v1275
        %v1277 = vrot.slane %v1269, %v1276
        %v1278 = vcombine.high %v1277, %v1277
        %v1281 = vmul.f32 %v1266, %v1277
        %v1282 = vmul.f32 %v1267, %v1278
        %v1283 = vadd.f32 %v1259, %v1281
        %v1284 = vadd.f32 %v1260, %v1282
        %1285 = vrot.lane.b32.xlu0 %v547, 112
        %v1286 = vpop.permute.xlu0 %1285
        %1287 = vrot.lane.b32.xlu0 %v548, 112
        %v1288 = vpop.permute.xlu0 %1287
        %vm1289 = vcmp.lt.s32.totalorder %v253, 112
        %v1290 = vsel %vm1289, %v1286, %v1288
        %v1291 = vsel %vm1289, %v1288, %v1286
        %s1292 = scalar_lea.vmem [#allocation2], 124
        %v1293 = vld [vmem:[%s1292] sm:$0xf]
        %v1296 = vunpack.c.l.s4 1983009808
        %v1297 = vunpack.c.0.s8 %v1296
        %v1298 = vlaneseq
        %v1299 = vshrl.u32 %v1298, 7
        %v1300 = vsub.s32 %v1297, %v1299
        %v1301 = vrot.slane %v1293, %v1300
        %v1302 = vcombine.high %v1301, %v1301
        %v1305 = vmul.f32 %v1290, %v1301
        %v1306 = vmul.f32 %v1291, %v1302
        %v1307 = vadd.f32 %v1283, %v1305
        %v1308 = vadd.f32 %v1284, %v1306
        %1309 = vrot.lane.b32.xlu0 %v547, 111
        %v1310 = vpop.permute.xlu0 %1309
        %1311 = vrot.lane.b32.xlu0 %v548, 111
        %v1312 = vpop.permute.xlu0 %1311
        %vm1313 = vcmp.lt.s32.totalorder %v253, 111
        %v1314 = vsel %vm1313, %v1310, %v1312
        %v1315 = vsel %vm1313, %v1312, %v1310
        %s1316 = scalar_lea.vmem [#allocation2], 128
        %v1317 = vld [vmem:[%s1316] sm:$0xf]
        %v1320 = vunpack.c.l.s4 1983009808
        %v1321 = vunpack.c.0.s8 %v1320
        %v1322 = vlaneseq
        %v1323 = vshrl.u32 %v1322, 7
        %v1324 = vsub.s32 %v1321, %v1323
        %v1325 = vrot.slane %v1317, %v1324
        %v1326 = vcombine.high %v1325, %v1325
        %v1329 = vmul.f32 %v1314, %v1325
        %v1330 = vmul.f32 %v1315, %v1326
        %v1331 = vadd.f32 %v1307, %v1329
        %v1332 = vadd.f32 %v1308, %v1330
        %1333 = vrot.lane.b32.xlu0 %v547, 110
        %v1334 = vpop.permute.xlu0 %1333
        %1335 = vrot.lane.b32.xlu0 %v548, 110
        %v1336 = vpop.permute.xlu0 %1335
        %vm1337 = vcmp.lt.s32.totalorder %v253, 110
        %v1338 = vsel %vm1337, %v1334, %v1336
        %v1339 = vsel %vm1337, %v1336, %v1334
        %s1340 = scalar_lea.vmem [#allocation2], 132
        %v1341 = vld [vmem:[%s1340] sm:$0xf]
        %v1344 = vunpack.c.l.s4 1983009808
        %v1345 = vunpack.c.0.s8 %v1344
        %v1346 = vlaneseq
        %v1347 = vshrl.u32 %v1346, 7
        %v1348 = vsub.s32 %v1345, %v1347
        %v1349 = vrot.slane %v1341, %v1348
        %v1350 = vcombine.high %v1349, %v1349
        %v1353 = vmul.f32 %v1338, %v1349
        %v1354 = vmul.f32 %v1339, %v1350
        %v1355 = vadd.f32 %v1331, %v1353
        %v1356 = vadd.f32 %v1332, %v1354
        %1357 = vrot.lane.b32.xlu0 %v547, 109
        %v1358 = vpop.permute.xlu0 %1357
        %1359 = vrot.lane.b32.xlu0 %v548, 109
        %v1360 = vpop.permute.xlu0 %1359
        %vm1361 = vcmp.lt.s32.totalorder %v253, 109
        %v1362 = vsel %vm1361, %v1358, %v1360
        %v1363 = vsel %vm1361, %v1360, %v1358
        %s1364 = scalar_lea.vmem [#allocation2], 136
        %v1365 = vld [vmem:[%s1364] sm:$0xf]
        %v1368 = vunpack.c.l.s4 1983009808
        %v1369 = vunpack.c.0.s8 %v1368
        %v1370 = vlaneseq
        %v1371 = vshrl.u32 %v1370, 7
        %v1372 = vsub.s32 %v1369, %v1371
        %v1373 = vrot.slane %v1365, %v1372
        %v1374 = vcombine.high %v1373, %v1373
        %v1377 = vmul.f32 %v1362, %v1373
        %v1378 = vmul.f32 %v1363, %v1374
        %v1379 = vadd.f32 %v1355, %v1377
        %v1380 = vadd.f32 %v1356, %v1378
        %1381 = vrot.lane.b32.xlu0 %v547, 99
        %v1382 = vpop.permute.xlu0 %1381
        %1383 = vrot.lane.b32.xlu0 %v548, 99
        %v1384 = vpop.permute.xlu0 %1383
        %vm1385 = vcmp.lt.s32.totalorder %v253, 99
        %v1386 = vsel %vm1385, %v1382, %v1384
        %v1387 = vsel %vm1385, %v1384, %v1382
        %s1388 = scalar_lea.vmem [#allocation2], 140
        %v1389 = vld [vmem:[%s1388] sm:$0xf]
        %v1392 = vunpack.c.l.s4 1983009808
        %v1393 = vunpack.c.0.s8 %v1392
        %v1394 = vlaneseq
        %v1395 = vshrl.u32 %v1394, 7
        %v1396 = vsub.s32 %v1393, %v1395
        %v1397 = vrot.slane %v1389, %v1396
        %v1398 = vcombine.high %v1397, %v1397
        %v1401 = vmul.f32 %v1386, %v1397
        %v1402 = vmul.f32 %v1387, %v1398
        %v1403 = vadd.f32 %v1379, %v1401
        %v1404 = vadd.f32 %v1380, %v1402
        %1405 = vrot.lane.b32.xlu0 %v547, 98
        %v1406 = vpop.permute.xlu0 %1405
        %1407 = vrot.lane.b32.xlu0 %v548, 98
        %v1408 = vpop.permute.xlu0 %1407
        %vm1409 = vcmp.lt.s32.totalorder %v253, 98
        %v1410 = vsel %vm1409, %v1406, %v1408
        %v1411 = vsel %vm1409, %v1408, %v1406
        %s1412 = scalar_lea.vmem [#allocation2], 144
        %v1413 = vld [vmem:[%s1412] sm:$0xf]
        %v1416 = vunpack.c.l.s4 1983009808
        %v1417 = vunpack.c.0.s8 %v1416
        %v1418 = vlaneseq
        %v1419 = vshrl.u32 %v1418, 7
        %v1420 = vsub.s32 %v1417, %v1419
        %v1421 = vrot.slane %v1413, %v1420
        %v1422 = vcombine.high %v1421, %v1421
        %v1425 = vmul.f32 %v1410, %v1421
        %v1426 = vmul.f32 %v1411, %v1422
        %v1427 = vadd.f32 %v1403, %v1425
        %v1428 = vadd.f32 %v1404, %v1426
        %1429 = vrot.lane.b32.xlu0 %v547, 97
        %v1430 = vpop.permute.xlu0 %1429
        %1431 = vrot.lane.b32.xlu0 %v548, 97
        %v1432 = vpop.permute.xlu0 %1431
        %vm1433 = vcmp.lt.s32.totalorder %v253, 97
        %v1434 = vsel %vm1433, %v1430, %v1432
        %v1435 = vsel %vm1433, %v1432, %v1430
        %s1436 = scalar_lea.vmem [#allocation2], 148
        %v1437 = vld [vmem:[%s1436] sm:$0xf]
        %v1440 = vunpack.c.l.s4 1983009808
        %v1441 = vunpack.c.0.s8 %v1440
        %v1442 = vlaneseq
        %v1443 = vshrl.u32 %v1442, 7
        %v1444 = vsub.s32 %v1441, %v1443
        %v1445 = vrot.slane %v1437, %v1444
        %v1446 = vcombine.high %v1445, %v1445
        %v1449 = vmul.f32 %v1434, %v1445
        %v1450 = vmul.f32 %v1435, %v1446
        %v1451 = vadd.f32 %v1427, %v1449
        %v1452 = vadd.f32 %v1428, %v1450
        %1453 = vrot.lane.b32.xlu0 %v547, 96
        %v1454 = vpop.permute.xlu0 %1453
        %1455 = vrot.lane.b32.xlu0 %v548, 96
        %v1456 = vpop.permute.xlu0 %1455
        %vm1457 = vcmp.lt.s32.totalorder %v253, 96
        %v1458 = vsel %vm1457, %v1454, %v1456
        %v1459 = vsel %vm1457, %v1456, %v1454
        %s1460 = scalar_lea.vmem [#allocation2], 152
        %v1461 = vld [vmem:[%s1460] sm:$0xf]
        %v1464 = vunpack.c.l.s4 1983009808
        %v1465 = vunpack.c.0.s8 %v1464
        %v1466 = vlaneseq
        %v1467 = vshrl.u32 %v1466, 7
        %v1468 = vsub.s32 %v1465, %v1467
        %v1469 = vrot.slane %v1461, %v1468
        %v1470 = vcombine.high %v1469, %v1469
        %v1473 = vmul.f32 %v1458, %v1469
        %v1474 = vmul.f32 %v1459, %v1470
        %v1475 = vadd.f32 %v1451, %v1473
        %v1476 = vadd.f32 %v1452, %v1474
        %1477 = vrot.lane.b32.xlu0 %v547, 95
        %v1478 = vpop.permute.xlu0 %1477
        %1479 = vrot.lane.b32.xlu0 %v548, 95
        %v1480 = vpop.permute.xlu0 %1479
        %vm1481 = vcmp.lt.s32.totalorder %v253, 95
        %v1482 = vsel %vm1481, %v1478, %v1480
        %v1483 = vsel %vm1481, %v1480, %v1478
        %s1484 = scalar_lea.vmem [#allocation2], 156
        %v1485 = vld [vmem:[%s1484] sm:$0xf]
        %v1488 = vunpack.c.l.s4 1983009808
        %v1489 = vunpack.c.0.s8 %v1488
        %v1490 = vlaneseq
        %v1491 = vshrl.u32 %v1490, 7
        %v1492 = vsub.s32 %v1489, %v1491
        %v1493 = vrot.slane %v1485, %v1492
        %v1494 = vcombine.high %v1493, %v1493
        %v1497 = vmul.f32 %v1482, %v1493
        %v1498 = vmul.f32 %v1483, %v1494
        %v1499 = vadd.f32 %v1475, %v1497
        %v1500 = vadd.f32 %v1476, %v1498
        %1501 = vrot.lane.b32.xlu0 %v547, 94
        %v1502 = vpop.permute.xlu0 %1501
        %1503 = vrot.lane.b32.xlu0 %v548, 94
        %v1504 = vpop.permute.xlu0 %1503
        %vm1505 = vcmp.lt.s32.totalorder %v253, 94
        %v1506 = vsel %vm1505, %v1502, %v1504
        %v1507 = vsel %vm1505, %v1504, %v1502
        %s1508 = scalar_lea.vmem [#allocation2], 160
        %v1509 = vld [vmem:[%s1508] sm:$0xf]
        %v1512 = vunpack.c.l.s4 1983009808
        %v1513 = vunpack.c.0.s8 %v1512
        %v1514 = vlaneseq
        %v1515 = vshrl.u32 %v1514, 7
        %v1516 = vsub.s32 %v1513, %v1515
        %v1517 = vrot.slane %v1509, %v1516
        %v1518 = vcombine.high %v1517, %v1517
        %v1521 = vmul.f32 %v1506, %v1517
        %v1522 = vmul.f32 %v1507, %v1518
        %v1523 = vadd.f32 %v1499, %v1521
        %v1524 = vadd.f32 %v1500, %v1522
        %1525 = vrot.lane.b32.xlu0 %v547, 93
        %v1526 = vpop.permute.xlu0 %1525
        %1527 = vrot.lane.b32.xlu0 %v548, 93
        %v1528 = vpop.permute.xlu0 %1527
        %vm1529 = vcmp.lt.s32.totalorder %v253, 93
        %v1530 = vsel %vm1529, %v1526, %v1528
        %v1531 = vsel %vm1529, %v1528, %v1526
        %s1532 = scalar_lea.vmem [#allocation2], 164
        %v1533 = vld [vmem:[%s1532] sm:$0xf]
        %v1536 = vunpack.c.l.s4 1983009808
        %v1537 = vunpack.c.0.s8 %v1536
        %v1538 = vlaneseq
        %v1539 = vshrl.u32 %v1538, 7
        %v1540 = vsub.s32 %v1537, %v1539
        %v1541 = vrot.slane %v1533, %v1540
        %v1542 = vcombine.high %v1541, %v1541
        %v1545 = vmul.f32 %v1530, %v1541
        %v1546 = vmul.f32 %v1531, %v1542
        %v1547 = vadd.f32 %v1523, %v1545
        %v1548 = vadd.f32 %v1524, %v1546
        %1549 = vrot.lane.b32.xlu0 %v547, 83
        %v1550 = vpop.permute.xlu0 %1549
        %1551 = vrot.lane.b32.xlu0 %v548, 83
        %v1552 = vpop.permute.xlu0 %1551
        %vm1553 = vcmp.lt.s32.totalorder %v253, 83
        %v1554 = vsel %vm1553, %v1550, %v1552
        %v1555 = vsel %vm1553, %v1552, %v1550
        %s1556 = scalar_lea.vmem [#allocation2], 168
        %v1557 = vld [vmem:[%s1556] sm:$0xf]
        %v1560 = vunpack.c.l.s4 1983009808
        %v1561 = vunpack.c.0.s8 %v1560
        %v1562 = vlaneseq
        %v1563 = vshrl.u32 %v1562, 7
        %v1564 = vsub.s32 %v1561, %v1563
        %v1565 = vrot.slane %v1557, %v1564
        %v1566 = vcombine.high %v1565, %v1565
        %v1569 = vmul.f32 %v1554, %v1565
        %v1570 = vmul.f32 %v1555, %v1566
        %v1571 = vadd.f32 %v1547, %v1569
        %v1572 = vadd.f32 %v1548, %v1570
        %1573 = vrot.lane.b32.xlu0 %v547, 82
        %v1574 = vpop.permute.xlu0 %1573
        %1575 = vrot.lane.b32.xlu0 %v548, 82
        %v1576 = vpop.permute.xlu0 %1575
        %vm1577 = vcmp.lt.s32.totalorder %v253, 82
        %v1578 = vsel %vm1577, %v1574, %v1576
        %v1579 = vsel %vm1577, %v1576, %v1574
        %s1580 = scalar_lea.vmem [#allocation2], 172
        %v1581 = vld [vmem:[%s1580] sm:$0xf]
        %v1584 = vunpack.c.l.s4 1983009808
        %v1585 = vunpack.c.0.s8 %v1584
        %v1586 = vlaneseq
        %v1587 = vshrl.u32 %v1586, 7
        %v1588 = vsub.s32 %v1585, %v1587
        %v1589 = vrot.slane %v1581, %v1588
        %v1590 = vcombine.high %v1589, %v1589
        %v1593 = vmul.f32 %v1578, %v1589
        %v1594 = vmul.f32 %v1579, %v1590
        %v1595 = vadd.f32 %v1571, %v1593
        %v1596 = vadd.f32 %v1572, %v1594
        %1597 = vrot.lane.b32.xlu0 %v547, 81
        %v1598 = vpop.permute.xlu0 %1597
        %1599 = vrot.lane.b32.xlu0 %v548, 81
        %v1600 = vpop.permute.xlu0 %1599
        %vm1601 = vcmp.lt.s32.totalorder %v253, 81
        %v1602 = vsel %vm1601, %v1598, %v1600
        %v1603 = vsel %vm1601, %v1600, %v1598
        %s1604 = scalar_lea.vmem [#allocation2], 176
        %v1605 = vld [vmem:[%s1604] sm:$0xf]
        %v1608 = vunpack.c.l.s4 1983009808
        %v1609 = vunpack.c.0.s8 %v1608
        %v1610 = vlaneseq
        %v1611 = vshrl.u32 %v1610, 7
        %v1612 = vsub.s32 %v1609, %v1611
        %v1613 = vrot.slane %v1605, %v1612
        %v1614 = vcombine.high %v1613, %v1613
        %v1617 = vmul.f32 %v1602, %v1613
        %v1618 = vmul.f32 %v1603, %v1614
        %v1619 = vadd.f32 %v1595, %v1617
        %v1620 = vadd.f32 %v1596, %v1618
        %1621 = vrot.lane.b32.xlu0 %v547, 80
        %v1622 = vpop.permute.xlu0 %1621
        %1623 = vrot.lane.b32.xlu0 %v548, 80
        %v1624 = vpop.permute.xlu0 %1623
        %vm1625 = vcmp.lt.s32.totalorder %v253, 80
        %v1626 = vsel %vm1625, %v1622, %v1624
        %v1627 = vsel %vm1625, %v1624, %v1622
        %s1628 = scalar_lea.vmem [#allocation2], 180
        %v1629 = vld [vmem:[%s1628] sm:$0xf]
        %v1632 = vunpack.c.l.s4 1983009808
        %v1633 = vunpack.c.0.s8 %v1632
        %v1634 = vlaneseq
        %v1635 = vshrl.u32 %v1634, 7
        %v1636 = vsub.s32 %v1633, %v1635
        %v1637 = vrot.slane %v1629, %v1636
        %v1638 = vcombine.high %v1637, %v1637
        %v1641 = vmul.f32 %v1626, %v1637
        %v1642 = vmul.f32 %v1627, %v1638
        %v1643 = vadd.f32 %v1619, %v1641
        %v1644 = vadd.f32 %v1620, %v1642
        %1645 = vrot.lane.b32.xlu0 %v547, 79
        %v1646 = vpop.permute.xlu0 %1645
        %1647 = vrot.lane.b32.xlu0 %v548, 79
        %v1648 = vpop.permute.xlu0 %1647
        %vm1649 = vcmp.lt.s32.totalorder %v253, 79
        %v1650 = vsel %vm1649, %v1646, %v1648
        %v1651 = vsel %vm1649, %v1648, %v1646
        %s1652 = scalar_lea.vmem [#allocation2], 184
        %v1653 = vld [vmem:[%s1652] sm:$0xf]
        %v1656 = vunpack.c.l.s4 1983009808
        %v1657 = vunpack.c.0.s8 %v1656
        %v1658 = vlaneseq
        %v1659 = vshrl.u32 %v1658, 7
        %v1660 = vsub.s32 %v1657, %v1659
        %v1661 = vrot.slane %v1653, %v1660
        %v1662 = vcombine.high %v1661, %v1661
        %v1665 = vmul.f32 %v1650, %v1661
        %v1666 = vmul.f32 %v1651, %v1662
        %v1667 = vadd.f32 %v1643, %v1665
        %v1668 = vadd.f32 %v1644, %v1666
        %1669 = vrot.lane.b32.xlu0 %v547, 78
        %v1670 = vpop.permute.xlu0 %1669
        %1671 = vrot.lane.b32.xlu0 %v548, 78
        %v1672 = vpop.permute.xlu0 %1671
        %vm1673 = vcmp.lt.s32.totalorder %v253, 78
        %v1674 = vsel %vm1673, %v1670, %v1672
        %v1675 = vsel %vm1673, %v1672, %v1670
        %s1676 = scalar_lea.vmem [#allocation2], 188
        %v1677 = vld [vmem:[%s1676] sm:$0xf]
        %v1680 = vunpack.c.l.s4 1983009808
        %v1681 = vunpack.c.0.s8 %v1680
        %v1682 = vlaneseq
        %v1683 = vshrl.u32 %v1682, 7
        %v1684 = vsub.s32 %v1681, %v1683
        %v1685 = vrot.slane %v1677, %v1684
        %v1686 = vcombine.high %v1685, %v1685
        %v1689 = vmul.f32 %v1674, %v1685
        %v1690 = vmul.f32 %v1675, %v1686
        %v1691 = vadd.f32 %v1667, %v1689
        %v1692 = vadd.f32 %v1668, %v1690
        %1693 = vrot.lane.b32.xlu0 %v547, 77
        %v1694 = vpop.permute.xlu0 %1693
        %1695 = vrot.lane.b32.xlu0 %v548, 77
        %v1696 = vpop.permute.xlu0 %1695
        %vm1697 = vcmp.lt.s32.totalorder %v253, 77
        %v1698 = vsel %vm1697, %v1694, %v1696
        %v1699 = vsel %vm1697, %v1696, %v1694
        %s1700 = scalar_lea.vmem [#allocation2], 192
        %v1701 = vld [vmem:[%s1700] sm:$0xf]
        %v1704 = vunpack.c.l.s4 1983009808
        %v1705 = vunpack.c.0.s8 %v1704
        %v1706 = vlaneseq
        %v1707 = vshrl.u32 %v1706, 7
        %v1708 = vsub.s32 %v1705, %v1707
        %v1709 = vrot.slane %v1701, %v1708
        %v1710 = vcombine.high %v1709, %v1709
        %v1713 = vmul.f32 %v1698, %v1709
        %v1714 = vmul.f32 %v1699, %v1710
        %v1715 = vadd.f32 %v1691, %v1713
        %v1716 = vadd.f32 %v1692, %v1714
        %v1719 = vrot.slane %v1715, 1
        %v1720 = vrot.slane %v1716, 1
        %v1723 = vadd.f32 %v1715, %v1719
        %v1724 = vadd.f32 %v1716, %v1720
        %v1725 = vxor.u32 %v1723, 2147483648
        %v1726 = vxor.u32 %v1724, 2147483648
        %v1727 = vmul.f32 %v1725, 1.442695
        %v1728 = vpow.pop %v1727
        %v1729 = vmul.f32 %v1726, 1.442695
        %v1730 = vpow.pop %v1729
        %v1731 = vadd.f32 %v1728, 1.0
        %v1732 = vadd.f32 %v1730, 1.0
        %v1733 = vrcp.pop %v1731
        %v1734 = vmul.f32 1.0, %v1733
        %v1735 = vrcp.pop %v1732
        %v1736 = vmul.f32 1.0, %v1735
        %v1737 = vlaneseq
        %v1738 = vshrl.u32 %v1737, 7
        %v1739 = vsub.s32 0, %v1738
        %v1740 = vrot.slane %v1734, %v1739
        %v1741 = vlaneseq
        %v1742 = vshrl.u32 %v1741, 7
        %v1743 = vsub.s32 0, %v1742
        %v1744 = vrot.slane %v1736, %v1743
        %v1745 = vmul.f32 %v500, %v1740
        %v1746 = vmul.f32 %v501, %v1744
        %v1747 = vmul.f32 %v502, %v1740
        %v1748 = vmul.f32 %v503, %v1744
        %v1749 = vmul.f32 %v504, %v1740
        %v1750 = vmul.f32 %v505, %v1744
        %v1751 = vmul.f32 %v506, %v1740
        %v1752 = vmul.f32 %v507, %v1744
        %1753 = vst [vmem:[%s205] sm:$0xff] %v1745
        %1754 = vst [vmem:[%s205 + $0x8] sm:$0xff] %v1746
        %1755 = vst [vmem:[%s205 + $0x10] sm:$0xff] %v1747
        %1756 = vst [vmem:[%s205 + $0x18] sm:$0xff] %v1748
        %1757 = vst [vmem:[%s205 + $0x20] sm:$0xff] %v1749
        %1758 = vst [vmem:[%s205 + $0x28] sm:$0xff] %v1750
        %1759 = vst [vmem:[%s205 + $0x30] sm:$0xff] %v1751
        %1760 = vst [vmem:[%s205 + $0x38] sm:$0xff] %v1752
        %s1761 = sand.u32 %s116, 1
        %s1762 = scalar_lea.sflag [#allocation4], %s1761
        %s1763 = sand.u32 %s116, 1
        %s1764 = smul.addr %s1763, 64
        %s1765 = scalar_lea.vmem [#allocation5], %s1764
        // Predicated region
        $region41: #{tpu_custom_call.1} parent=35 // pred_check
          %p1766 = pneg %p126
        $region42: #{tpu_custom_call.1} parent=35 // pred_check_branch
          %1768 = sbr.rel (%p1766) target = $region44
        $region43: #{tpu_custom_call.1} parent=35 // pred_region
          %s1770 = ssub.s32 1024, 1024
          %1771 = vsyncadd %s1762, %s1770
          %s1772 = smul.addr %s19, 8
          %s1773 = smul.addr %s1772, 128
          %s1774 = scalar_lea.hbm %s4, %s1773
          %s1775 = sshll.u32 %s1765, 4
          %s1776 = int_to_ptr.vmem [resolvable:$true] %s1775
          %1781 = dma.vmem_to_hbm [thread:$0]  %s1776, 1024, %s1774, %s1762, 256, 256, 16
        $region44: #{tpu_custom_call.1} parent=35 // pred_fallthru
          _
      $region36: #{tpu_custom_call.1} parent=5 // pred_fallthru
        _
      %p1782 = scmp.le.s32.totalorder 2, %s14
      // Predicated region
      $region45: #{tpu_custom_call.1} parent=5 // pred_check
        %p1783 = pneg %p1782
      $region46: #{tpu_custom_call.1} parent=5 // pred_check_branch
        %1785 = sbr.rel (%p1783) target = $region48
      $region47: #{tpu_custom_call.1} parent=5 // pred_region
        %s1786 = ssub.s32 %s14, 2
        // Predicated region
        $region49: #{tpu_custom_call.1} parent=47 // pred_check
          %p1787 = pneg %p132
        $region50: #{tpu_custom_call.1} parent=47 // pred_check_branch
          %1789 = sbr.rel (%p1787) target = $region52
        $region51: #{tpu_custom_call.1} parent=47 // pred_region
          %s1790 = sand.u32 %s117, 1
          %s1791 = scalar_lea.sflag [#allocation4], %s1790
          %s1792 = sand.u32 %s117, 1
          %s1793 = smul.addr %s1792, 64
          %s1794 = scalar_lea.vmem [#allocation5], %s1793
          %1795 = dma.done %s1791, 1024
        $region52: #{tpu_custom_call.1} parent=47 // pred_fallthru
          _
      $region48: #{tpu_custom_call.1} parent=5 // pred_fallthru
        _
    $region6: #{tpu_custom_call.1} parent=1 // loop_footer
      %s18 = sadd.s32 1, %s14
    $region7: #{tpu_custom_call.1} parent=1 // loop_footer_branch
      %13 = sbr.rel target = $region3
    $region8: #{tpu_custom_call.1} parent=1 // loop_exit
      _
    %1796 = vsyncpa [#allocation3], 1
    %s1797 = scalar_lea.sflag [#allocation3], 1
    %1798 = vsyncpa %s1797, 1
    %1799 = vsyncpa [#allocation4], 1
    %s1800 = scalar_lea.sflag [#allocation4], 1
    %1801 = vsyncpa %s1800, 1

</llo_original>
